<compile_context>
chip_gen: v7x
topology: tpu7x:2x2x1
jax: 0.10.0
libtpu: 0.0.40
codegen_flags: <defaults>
</compile_context>

<pallas_src>
import numpy as np

import jax
import jax.numpy as jnp
from jax.experimental import pallas as pl
from jax.experimental.pallas import tpu as pltpu

SEG_TILE = 256          # segments per output block (output lane axis; multiple of 128)
MIN_FRAG_TILE = 256     # density-matched fragment-tile clamp (multiples of 128)
MAX_FRAG_TILE = 2048    # raise vmem_limit_bytes before pushing past this


def _pool_kernel(sb_ref, ft_ref, first_ref, last_ref,     # scalar-prefetch work list
                 idx_ref, embt_ref,                        # inputs
                 out_ref,                                  # output block (out dtype)
                 acc_ref):                                 # f32 VMEM accumulator
    """One work item = (segment block sb[i], fragment tile ft[i]).

    idx_ref  : (1, 1, FRAG_TILE) int32  cellxgene index per fragment (lane-major)
    embt_ref : (emb_dim, FRAG_TILE)     transposed fragment embeddings
    out_ref  : (emb_dim, SEG_TILE)      lane-dense output block, written on last==1
    acc_ref  : (emb_dim, SEG_TILE) f32  resident across a block's consecutive items
    """
    del ft_ref  # only used by the index_maps
    i = pl.program_id(0)
    seg_tile = out_ref.shape[1]

    @pl.when(first_ref[i] == 1)
    def _():
        acc_ref[...] = jnp.zeros_like(acc_ref)

    # Local segment id of every fragment in this tile w.r.t. this segment block.
    # Fragments of other blocks (straddling tiles) and padded fragments (sentinel
    # index >= n_seg_p) fall outside [0, seg_tile) and therefore match no row.
    local = idx_ref[0] - sb_ref[i] * seg_tile                          # (1, FRAG_TILE)
    seg_ids = jax.lax.broadcasted_iota(jnp.int32, (seg_tile, local.shape[-1]), 0)
    onehot_t = (seg_ids == local).astype(embt_ref.dtype)               # (SEG, FRAG)

    # (D, FRAG) x (SEG, FRAG) contracted over FRAG -> (D, SEG); f32 MXU accumulation.
    # bf16 inputs stay on the bf16 MXU fast path end to end.
    acc_ref[...] += jnp.einsum("df,sf->ds", embt_ref[...], onehot_t,
                               preferred_element_type=jnp.float32)

    # Finalize: one cast + store per segment block (last work item of its run).
    @pl.when(last_ref[i] == 1)
    def _():
        out_ref[...] = acc_ref[...].astype(out_ref.dtype)


def embedding_gene_pooler(fragment_embedding, fragment_cellxgene_ix, cell_n, gene_n,
                          *, seg_tile=SEG_TILE, frag_tile=None):
    """Pallas equivalent of EmbeddingGenePooler.forward (sorted-index segment sum).

    fragment_embedding:    [n_fragments, emb_dim] float32 or bfloat16
    fragment_cellxgene_ix: [n_fragments] int, sorted ascending, values in [0, cell_n*gene_n).
                           Must be CONCRETE (not a jit tracer): the work list is built
                           host-side at trace time, and the kernel recompiles when the
                           work list / padded shapes change.
    returns:               [cell_n, gene_n, emb_dim] in the embedding dtype
    """
    assert seg_tile % 128 == 0
    n_frag, emb_dim = fragment_embedding.shape
    n_seg = cell_n * gene_n
    out_dtype = fragment_embedding.dtype

    if n_frag == 0:
        return jnp.zeros((cell_n, gene_n, emb_dim), out_dtype)

    # ---- Host-side (trace-time) work list from the concrete sorted indices. ----
    idx_np = np.asarray(fragment_cellxgene_ix).astype(np.int64)
    assert np.all(np.diff(idx_np) >= 0), "fragment_cellxgene_ix must be sorted"
    assert idx_np.min() >= 0 and idx_np.max() < n_seg, "cellxgene index out of range"

    num_seg_blocks = -(-n_seg // seg_tile)
    n_seg_p = num_seg_blocks * seg_tile

    # Fragment range [bounds[b], bounds[b+1]) owned by each segment block.
    bounds = np.searchsorted(idx_np, np.arange(num_seg_blocks + 1) * seg_tile)
    nonempty = bounds[1:] > bounds[:-1]

    # Density-matched fragment tile: ~avg fragments per non-empty segment block.
    if frag_tile is None:
        avg = -(-n_frag // max(int(nonempty.sum()), 1))
        frag_tile = int(np.clip(-(-avg // 128) * 128, MIN_FRAG_TILE, MAX_FRAG_TILE))
    assert frag_tile % 128 == 0
    num_frag_tiles = -(-n_frag // frag_tile)
    n_frag_p = num_frag_tiles * frag_tile

    # Work items: non-empty segment blocks only.  A fragment tile straddling a block
    # boundary appears in both blocks (the per-block one-hot masks the other block's
    # fragments, so nothing is lost or duplicated).  first/last flag accumulator
    # init / finalize of each block's contiguous run.
    work_sb, work_ft, work_first, work_last = [], [], [], []
    for b in range(num_seg_blocks):
        lo, hi = int(bounds[b]), int(bounds[b + 1])
        if hi <= lo:
            continue                       # empty block: zero-filled in the epilogue
        t0, t1 = lo // frag_tile, (hi - 1) // frag_tile
        for t in range(t0, t1 + 1):
            work_sb.append(b)
            work_ft.append(t)
            work_first.append(1 if t == t0 else 0)
            work_last.append(1 if t == t1 else 0)
    n_work = len(work_sb)
    work_sb = jnp.asarray(work_sb, jnp.int32)
    work_ft = jnp.asarray(work_ft, jnp.int32)
    work_first = jnp.asarray(work_first, jnp.int32)
    work_last = jnp.asarray(work_last, jnp.int32)

    # ---- Data layout. ----
    # Embeddings transposed so segments land on the 128-lane axis of the output
    # (lane-dense unmasked stores); padded fragments are zero.
    emb_t = jnp.pad(fragment_embedding, ((0, n_frag_p - n_frag), (0, 0))).T  # (D, n_frag_p)
    # Indices lane-major (dense contiguous DMA, tiny VMEM footprint); padded fragments
    # get an out-of-range sentinel so they can never match a segment column.
    idx_rows = jnp.pad(fragment_cellxgene_ix.astype(jnp.int32),
                       (0, n_frag_p - n_frag),
                       constant_values=n_seg_p).reshape(num_frag_tiles, 1, frag_tile)

    out = pl.pallas_call(
        _pool_kernel,
        out_shape=jax.ShapeDtypeStruct((emb_dim, n_seg_p), out_dtype),
        grid_spec=pltpu.PrefetchScalarGridSpec(
            num_scalar_prefetch=4,
            grid=(n_work,),
            in_specs=[
                pl.BlockSpec((1, 1, frag_tile),
                             lambda i, sb, ft, first, last: (ft[i], 0, 0)),
                pl.BlockSpec((emb_dim, frag_tile),
                             lambda i, sb, ft, first, last: (0, ft[i])),
            ],
            out_specs=pl.BlockSpec((emb_dim, seg_tile),
                                   lambda i, sb, ft, first, last: (0, sb[i])),
            scratch_shapes=[pltpu.VMEM((emb_dim, seg_tile), jnp.float32)],
        ),
        # NOTE(v7x): for dual-TensorCore use, shard the work list itself across cores
        # (leading core-parallel axis with per-core work arrays split at a segment-block
        # boundary) rather than splitting emb_dim; kept single-core here for portability.
        compiler_params=pltpu.CompilerParams(
            dimension_semantics=("arbitrary",),
        ),
    )(work_sb, work_ft, work_first, work_last, idx_rows, emb_t)

    # Zero-fill segment blocks that had no fragments (never visited by the grid).
    # Fused by XLA into the transpose/reshape epilogue below.
    if not bool(nonempty.all()):
        seg_mask = jnp.repeat(jnp.asarray(nonempty), seg_tile)           # (n_seg_p,)
        out = jnp.where(seg_mask[None, :], out, jnp.zeros((), out.dtype))

    # (emb_dim, n_seg_p) -> (cell_n, gene_n, emb_dim), dtype-preserving like torch_scatter.
    return out.T[:n_seg].reshape(cell_n, gene_n, emb_dim)


if __name__ == "__main__":
    # Small deterministic example: 24 cells x 25 genes = 600 segments -> 3 segment
    # blocks of 256.  Segment ids are drawn from [0, 256) U [512, 600) so the middle
    # block is completely empty (exercises the skipped-block zero-fill path), and the
    # 3000 fragments span two density-matched fragment tiles (exercises multi-tile
    # accumulation and a tile straddling a segment-block boundary).
    cell_n, gene_n = 24, 25
    emb_dim = 16
    n_fragments = 3000
    n_seg = cell_n * gene_n

    key = jax.random.PRNGKey(0)
    k_emb, k_seg = jax.random.split(key)

    fragment_embedding = jax.random.normal(k_emb, (n_fragments, emb_dim), jnp.float32)
    raw = jax.random.randint(k_seg, (n_fragments,), 0, 344)      # 344 = 256 + 88
    fragment_cellxgene_ix = jnp.where(raw < 256, raw, raw + 256).astype(jnp.int32)
    # segment_sum_coo requires sorted indices (the torch module asserts this in debug mode).
    order = jnp.argsort(fragment_cellxgene_ix)
    fragment_cellxgene_ix = fragment_cellxgene_ix[order]
    fragment_embedding = fragment_embedding[order]

    # Pure-JAX reference (scatter-add segment sum).
    ref = (jnp.zeros((n_seg, emb_dim), jnp.float32)
           .at[fragment_cellxgene_ix].add(fragment_embedding)
           .reshape(cell_n, gene_n, emb_dim))

    # 1) float32 path.  Tolerance covers the MXU's default (possibly bf16-pass) f32
    #    matmul precision; a real indexing/accumulation bug would be orders larger.
    out_f32 = embedding_gene_pooler(fragment_embedding, fragment_cellxgene_ix,
                                    cell_n, gene_n)
    out_f32 = jax.block_until_ready(out_f32)
    assert out_f32.shape == (cell_n, gene_n, emb_dim)
    assert out_f32.dtype == jnp.float32
    assert jnp.allclose(out_f32, ref, atol=1e-1, rtol=1e-2)

    # 2) bf16 fast path (bf16 embeddings + bf16 one-hot, f32 accumulation, bf16 out).
    emb_bf16 = fragment_embedding.astype(jnp.bfloat16)
    out_bf16 = embedding_gene_pooler(emb_bf16, fragment_cellxgene_ix, cell_n, gene_n)
    out_bf16 = jax.block_until_ready(out_bf16)
    assert out_bf16.dtype == jnp.bfloat16
    ref_bf16 = (jnp.zeros((n_seg, emb_dim), jnp.float32)
                .at[fragment_cellxgene_ix].add(emb_bf16.astype(jnp.float32))
                .reshape(cell_n, gene_n, emb_dim))
    assert jnp.allclose(out_bf16.astype(jnp.float32), ref_bf16, atol=1e-1, rtol=5e-2)

    print("KERNEL_OK")
</pallas_src>

<mosaic_0001>
module attributes {stable_mosaic.version = 11 : i64} {
  func.func @_pool_kernel(%arg0: i32, %arg1: memref<3xi32, #tpu.memory_space<smem>>, %arg2: memref<3xi32, #tpu.memory_space<smem>>, %arg3: memref<3xi32, #tpu.memory_space<smem>>, %arg4: memref<3xi32, #tpu.memory_space<smem>>, %arg5: memref<1x1x1536xi32, #tpu.memory_space<vmem>>, %arg6: memref<16x1536xf32, #tpu.memory_space<vmem>>, %arg7: memref<16x256xf32, #tpu.memory_space<vmem>>, %arg8: memref<16x256xf32, #tpu.memory_space<vmem>>) attributes {dimension_semantics = [#tpu.dimension_semantics<arbitrary>], iteration_bounds = array<i64: 3>, scalar_prefetch = 4 : i64, scratch_operands = 1 : i64, tpu.core_type = #tpu.core_type<tc>, window_params = [{transform_indices = @transform_0, window_bounds = array<i64: 1, 1, 1536>}, {transform_indices = @transform_1, window_bounds = array<i64: 16, 1536>}, {transform_indices = @transform_2, window_bounds = array<i64: 16, 256>}]} {
    %0 = arith.index_cast %arg0 : i32 to index
    %1 = memref.load %arg3[%0] : memref<3xi32, #tpu.memory_space<smem>>
    %c1_i32 = arith.constant 1 : i32
    %2 = arith.cmpi eq, %1, %c1_i32 : i32
    %3 = arith.extui %2 : i1 to i32
    %c0_i32 = arith.constant 0 : i32
    %4 = arith.cmpi ne, %3, %c0_i32 : i32
    scf.if %4 {
      %cst_10 = arith.constant 0.000000e+00 : f32
      %27 = vector.broadcast %cst_10 : f32 to vector<16x256xf32>
      %c0_11 = arith.constant 0 : index
      %c0_12 = arith.constant 0 : index
      %28 = vector.load %arg8[%c0_11, %c0_12] : memref<16x256xf32, #tpu.memory_space<vmem>>, vector<16x256xf32>
      tpu.vector_store %arg8[%c0_11, %c0_12], %27 {strides = array<i32>} : memref<16x256xf32, #tpu.memory_space<vmem>>, vector<16x256xf32>,
    } else {
    }
    %c0 = arith.constant 0 : index
    %c0_0 = arith.constant 0 : index
    %c0_1 = arith.constant 0 : index
    %5 = vector.load %arg5[%c0, %c0_0, %c0_1] : memref<1x1x1536xi32, #tpu.memory_space<vmem>>, vector<1x1x1536xi32>
    %6 = vector.shape_cast %5 : vector<1x1x1536xi32> to vector<1x1536xi32>
    %7 = arith.index_cast %arg0 : i32 to index
    %8 = memref.load %arg1[%7] : memref<3xi32, #tpu.memory_space<smem>>
    %c256_i32 = arith.constant 256 : i32
    %9 = arith.muli %8, %c256_i32 : i32
    %10 = vector.broadcast %9 : i32 to vector<1x1536xi32>
    %11 = arith.subi %6, %10 : vector<1x1536xi32>
    %12 = tpu.iota {dimensions = array<i32: 0>} : vector<256x1536xi32>
    %13 = vector.broadcast %11 : vector<1x1536xi32> to vector<256x1536xi32>
    %14 = arith.cmpi eq, %12, %13 : vector<256x1536xi32>
    %15 = arith.extui %14 : vector<256x1536xi1> to vector<256x1536xi32>
    %16 = arith.sitofp %15 : vector<256x1536xi32> to vector<256x1536xf32>
    %c0_2 = arith.constant 0 : index
    %c0_3 = arith.constant 0 : index
    %17 = vector.load %arg8[%c0_2, %c0_3] : memref<16x256xf32, #tpu.memory_space<vmem>>, vector<16x256xf32>
    %c0_4 = arith.constant 0 : index
    %c0_5 = arith.constant 0 : index
    %18 = vector.load %arg6[%c0_4, %c0_5] : memref<16x1536xf32, #tpu.memory_space<vmem>>, vector<16x1536xf32>
    "tpu.trace_start"() <{level = 10 : i32, message = "df,sf->ds"}> : () -> ()
    %cst = arith.constant dense<0.000000e+00> : vector<16x256xf32>
    %19 = tpu.matmul %18, %16, %cst {dimension_numbers = #tpu.dot_dimension_numbers<[1], [1], [0], [0], [0, 0, 1, 0], [], []>} : vector<16x1536xf32>, vector<256x1536xf32>, vector<16x256xf32> -> vector<16x256xf32>
    "tpu.trace_stop"() : () -> ()
    %20 = arith.addf %17, %19 : vector<16x256xf32>
    %c0_6 = arith.constant 0 : index
    %c0_7 = arith.constant 0 : index
    %21 = vector.load %arg8[%c0_6, %c0_7] : memref<16x256xf32, #tpu.memory_space<vmem>>, vector<16x256xf32>
    tpu.vector_store %arg8[%c0_6, %c0_7], %20 {strides = array<i32>} : memref<16x256xf32, #tpu.memory_space<vmem>>, vector<16x256xf32>,
    %22 = arith.index_cast %arg0 : i32 to index
    %23 = memref.load %arg4[%22] : memref<3xi32, #tpu.memory_space<smem>>
    %c1_i32_8 = arith.constant 1 : i32
    %24 = arith.cmpi eq, %23, %c1_i32_8 : i32
    %25 = arith.extui %24 : i1 to i32
    %c0_i32_9 = arith.constant 0 : i32
    %26 = arith.cmpi ne, %25, %c0_i32_9 : i32
    scf.if %26 {
      %c0_10 = arith.constant 0 : index
      %c0_11 = arith.constant 0 : index
      %27 = vector.load %arg8[%c0_10, %c0_11] : memref<16x256xf32, #tpu.memory_space<vmem>>, vector<16x256xf32>
      %c0_12 = arith.constant 0 : index
      %c0_13 = arith.constant 0 : index
      %28 = vector.load %arg7[%c0_12, %c0_13] : memref<16x256xf32, #tpu.memory_space<vmem>>, vector<16x256xf32>
      tpu.vector_store %arg7[%c0_12, %c0_13], %27 {strides = array<i32>} : memref<16x256xf32, #tpu.memory_space<vmem>>, vector<16x256xf32>,
    } else {
    }
    return
  }
  func.func @transform_0(%arg0: i32, %arg1: memref<3xi32, #tpu.memory_space<smem>>, %arg2: memref<3xi32, #tpu.memory_space<smem>>, %arg3: memref<3xi32, #tpu.memory_space<smem>>, %arg4: memref<3xi32, #tpu.memory_space<smem>>) -> (i32, i32, i32) {
    %0 = arith.index_cast %arg0 : i32 to index
    %1 = memref.load %arg2[%0] : memref<3xi32, #tpu.memory_space<smem>>
    %c0_i32 = arith.constant 0 : i32
    %c0_i32_0 = arith.constant 0 : i32
    %c0_i32_1 = arith.constant 0 : i32
    return %1, %c0_i32, %c0_i32_0 : i32, i32, i32
  }
  func.func @transform_1(%arg0: i32, %arg1: memref<3xi32, #tpu.memory_space<smem>>, %arg2: memref<3xi32, #tpu.memory_space<smem>>, %arg3: memref<3xi32, #tpu.memory_space<smem>>, %arg4: memref<3xi32, #tpu.memory_space<smem>>) -> (i32, i32) {
    %0 = arith.index_cast %arg0 : i32 to index
    %1 = memref.load %arg2[%0] : memref<3xi32, #tpu.memory_space<smem>>
    %c0_i32 = arith.constant 0 : i32
    %c0_i32_0 = arith.constant 0 : i32
    return %c0_i32, %1 : i32, i32
  }
  func.func @transform_2(%arg0: i32, %arg1: memref<3xi32, #tpu.memory_space<smem>>, %arg2: memref<3xi32, #tpu.memory_space<smem>>, %arg3: memref<3xi32, #tpu.memory_space<smem>>, %arg4: memref<3xi32, #tpu.memory_space<smem>>) -> (i32, i32) {
    %0 = arith.index_cast %arg0 : i32 to index
    %1 = memref.load %arg1[%0] : memref<3xi32, #tpu.memory_space<smem>>
    %c0_i32 = arith.constant 0 : i32
    %c0_i32_0 = arith.constant 0 : i32
    return %c0_i32, %1 : i32, i32
  }
}

</mosaic_0001>

<llo_original>
// kernel: tpu_custom_call.1
$region0: #{tpu_custom_call.1}
  #allocation0 [shape = 'u32[]', space=smem, size = 0x4, offset = 0x4, fixed_abs, tag = 'smem constant byte address 0x4 - core index']
  #allocation1 [shape = 'u32[144,128]{1,0:T(1,128)}', space=vmem, size = 0x12000, scoped, tag = 'internal scratch']
  #allocation2 [shape = 'f32[16,256]{1,0:T(8,128)}', space=vmem, size = 0x4000, scoped, tag = 'scratch operand']
  #allocation3 [shape = 's32[1]{0}', space=sflag, size = 0x4, scoped, tag = 'scoped memory for tpu_custom_call.1']
  #allocation4 [shape = 'u8[512]{0}', space=smem, size = 0x200, scoped, tag = 'prefetched SMEM operand 0']
  #allocation5 [shape = 'u8[512]{0}', space=smem, size = 0x200, scoped, tag = 'prefetched SMEM operand 1']
  #allocation6 [shape = 'u8[512]{0}', space=smem, size = 0x200, scoped, tag = 'prefetched SMEM operand 2']
  #allocation7 [shape = 'u8[512]{0}', space=smem, size = 0x200, scoped, tag = 'prefetched SMEM operand 3']
  %s0 = inlined_call_operand.hbm [shape: s32[3], index: 0, kind: input, shape index: {}]
  %s1 = inlined_call_operand.vmem [shape: s32[3], index: 1, kind: input, shape index: {}]
  %s2 = inlined_call_operand.vmem [shape: s32[3], index: 2, kind: input, shape index: {}]
  %s3 = inlined_call_operand.vmem [shape: s32[3], index: 3, kind: input, shape index: {}]
  %s4 = inlined_call_operand.hbm [shape: s32[2,1,1536], index: 4, kind: input, shape index: {}]
  %s5 = inlined_call_operand.hbm [shape: f32[16,3072], index: 5, kind: input, shape index: {}]
  %s6 = inlined_call_operand.hbm [shape: f32[16,768], index: 6, kind: output, shape index: {}]
  %s7 = sld [smem:[#allocation0]]
  $region57: #{tpu_custom_call.1} parent=0
    _
  %s9 = ssub.s32 1, %s7
  %s10 = scalar_select 0, %s9, %s7
  %12 = dma.hbm_to_smem %s0, 16, [#allocation4], [#allocation3]
  %s13 = sshll.u32 %s1, 4
  %s14 = int_to_ptr.vmem [resolvable:$true] %s13
  %16 = dma.vmem_to_smem %s14, 16, [#allocation5], [#allocation3]
  %s17 = sshll.u32 %s2, 4
  %s18 = int_to_ptr.vmem [resolvable:$true] %s17
  %20 = dma.vmem_to_smem %s18, 16, [#allocation6], [#allocation3]
  %s21 = sshll.u32 %s3, 4
  %s22 = int_to_ptr.vmem [resolvable:$true] %s21
  %24 = dma.vmem_to_smem %s22, 16, [#allocation7], [#allocation3]
  %25 = dma.done [#allocation3], 64
  %26 = sfence
  $region1: #{tpu_custom_call.1} parent=0
    #allocation8 [shape = 'u8[12288]{0}', space=vmem, size = 0x3000, scoped, tag = 'input window, operand 4']
    #allocation9 [shape = 's32[2]{0}', space=sflag, size = 0x8, scoped, tag = 'scoped memory for tpu_custom_call.1']
    #allocation10 [shape = 's32[2]{0}', space=sflag, size = 0x8, scoped, tag = 'scoped memory for tpu_custom_call.1']
    #allocation11 [shape = 'u8[196608]{0}', space=vmem, size = 0x30000, scoped, tag = 'input window, operand 5']
    #allocation12 [shape = 's32[2]{0}', space=sflag, size = 0x8, scoped, tag = 'scoped memory for tpu_custom_call.1']
    #allocation13 [shape = 'u8[32768]{0}', space=vmem, size = 0x8000, scoped, tag = 'output window, operand 0']
    %27 = vsyncpa [#allocation9], 0
    %s28 = scalar_lea.sflag [#allocation9], 1
    %29 = vsyncpa %s28, 0
    %30 = vsyncpa [#allocation12], 0
    %s31 = scalar_lea.sflag [#allocation12], 1
    %32 = vsyncpa %s31, 0
    %33 = vsyncpa [#allocation10], 0
    %s34 = scalar_lea.sflag [#allocation10], 1
    %35 = vsyncpa %s34, 0
    loop: start=0, step=1, limit=5
    $region2: #{tpu_custom_call.1} parent=1 // loop_pre_header
      _
    $region3: #{tpu_custom_call.1} parent=1 // loop_header
      %s37 = sphi 0, %s41
      %p38 = scmp.ge.s32.totalorder %s37, 5
      %s49 = sphi 0, %s51
      %s52 = sphi 0, %s49
      %s53 = sphi 0, %s52
      %s69 = sphi 0, %s53
      %s77 = sphi 0, %s79
      %s80 = sphi 0, %s77
      %s81 = sphi 0, %s80
      %s97 = sphi 0, %s81
      %s105 = sphi 0, %s107
      %s108 = sphi 0, %s105
      %s109 = sphi 0, %s108
      %s125 = sphi 0, %s109
    $region4: #{tpu_custom_call.1} parent=1 // loop_header_branch
      %40 = sbr.rel (%p38) target = $region8
    $region5: #{tpu_custom_call.1} parent=1 // loop_body
      %s42 = ssub.s32 %s37, 1
      %s43 = ssub.s32 %s37, 2
      %s44 = sadd.s32 %s37, 1
      %s45 = sld [smem:[#allocation5 + %s37]]
      %s46 = sld [smem:[#allocation5 + %s44]]
      %s47 = ssub.s32 %s45, %s46
      %p48 = scmp.eq.s32.totalorder %s47, 0
      %s50 = sadd.s32 %s49, 1
      %s51 = scalar_select %p48, %s49, %s50
      %p54 = pneg %p48
      %p55 = scmp.eq.s32.totalorder %s37, 2
      %p56 = por %p54, %p55
      %p57 = scmp.ne.s32.totalorder %s49, %s52
      %p58 = scmp.eq.s32.totalorder %s37, 0
      %p59 = por %p57, %p58
      %p60 = scmp.ne.s32.totalorder %s49, %s52
      %p61 = scmp.eq.s32.totalorder %s42, 2
      %p62 = por %p60, %p61
      %p63 = scmp.ne.s32.totalorder %s52, %s53
      %p64 = scmp.eq.s32.totalorder %s42, 0
      %p65 = por %p63, %p64
      %p66 = scmp.ne.s32.totalorder %s52, %s53
      %p67 = scmp.eq.s32.totalorder %s43, 2
      %p68 = por %p66, %p67
      %p70 = scmp.ne.s32.totalorder %s53, %s69
      %p71 = scmp.eq.s32.totalorder %s43, 0
      %p72 = por %p70, %p71
      %s73 = sld [smem:[#allocation5 + %s37]]
      %s74 = sld [smem:[#allocation5 + %s44]]
      %s75 = ssub.s32 %s73, %s74
      %p76 = scmp.eq.s32.totalorder %s75, 0
      %s78 = sadd.s32 %s77, 1
      %s79 = scalar_select %p76, %s77, %s78
      %p82 = pneg %p76
      %p83 = scmp.eq.s32.totalorder %s37, 2
      %p84 = por %p82, %p83
      %p85 = scmp.ne.s32.totalorder %s77, %s80
      %p86 = scmp.eq.s32.totalorder %s37, 0
      %p87 = por %p85, %p86
      %p88 = scmp.ne.s32.totalorder %s77, %s80
      %p89 = scmp.eq.s32.totalorder %s42, 2
      %p90 = por %p88, %p89
      %p91 = scmp.ne.s32.totalorder %s80, %s81
      %p92 = scmp.eq.s32.totalorder %s42, 0
      %p93 = por %p91, %p92
      %p94 = scmp.ne.s32.totalorder %s80, %s81
      %p95 = scmp.eq.s32.totalorder %s43, 2
      %p96 = por %p94, %p95
      %p98 = scmp.ne.s32.totalorder %s81, %s97
      %p99 = scmp.eq.s32.totalorder %s43, 0
      %p100 = por %p98, %p99
      %s101 = sld [smem:[#allocation4 + %s37]]
      %s102 = sld [smem:[#allocation4 + %s44]]
      %s103 = ssub.s32 %s101, %s102
      %p104 = scmp.eq.s32.totalorder %s103, 0
      %s106 = sadd.s32 %s105, 1
      %s107 = scalar_select %p104, %s105, %s106
      %p110 = pneg %p104
      %p111 = scmp.eq.s32.totalorder %s37, 2
      %p112 = por %p110, %p111
      %p113 = scmp.ne.s32.totalorder %s105, %s108
      %p114 = scmp.eq.s32.totalorder %s37, 0
      %p115 = por %p113, %p114
      %p116 = scmp.ne.s32.totalorder %s105, %s108
      %p117 = scmp.eq.s32.totalorder %s42, 2
      %p118 = por %p116, %p117
      %p119 = scmp.ne.s32.totalorder %s108, %s109
      %p120 = scmp.eq.s32.totalorder %s42, 0
      %p121 = por %p119, %p120
      %p122 = scmp.ne.s32.totalorder %s108, %s109
      %p123 = scmp.eq.s32.totalorder %s43, 2
      %p124 = por %p122, %p123
      %p126 = scmp.ne.s32.totalorder %s109, %s125
      %p127 = scmp.eq.s32.totalorder %s43, 0
      %p128 = por %p126, %p127
      %p129 = scmp.le.s32.totalorder 1, %s37
      %p130 = scmp.lt.s32.totalorder %s37, 4
      %p131 = pnand %p129, %p130
      %p132 = pneg %p131
      // Predicated region
      $region9: #{tpu_custom_call.1} parent=5 // pred_check
        _
      $region10: #{tpu_custom_call.1} parent=5 // pred_check_branch
        %134 = sbr.rel (%p131) target = $region12
      $region11: #{tpu_custom_call.1} parent=5 // pred_region
        %s135 = ssub.s32 %s37, 1
      $region12: #{tpu_custom_call.1} parent=5 // pred_fallthru
        _
      %p136 = scmp.lt.s32.totalorder %s37, 3
      // Predicated region
      $region13: #{tpu_custom_call.1} parent=5 // pred_check
        %p137 = pneg %p136
      $region14: #{tpu_custom_call.1} parent=5 // pred_check_branch
        %139 = sbr.rel (%p137) target = $region16
      $region15: #{tpu_custom_call.1} parent=5 // pred_region
        // Predicated region
        $region17: #{tpu_custom_call.1} parent=15 // pred_check
          %p140 = pneg %p59
        $region18: #{tpu_custom_call.1} parent=15 // pred_check_branch
          %142 = sbr.rel (%p140) target = $region20
        $region19: #{tpu_custom_call.1} parent=15 // pred_region
          %s143 = sand.u32 %s49, 1
          %s144 = scalar_lea.sflag [#allocation9], %s143
          %s145 = sand.u32 %s49, 1
          %s146 = smul.addr %s145, 12
          %s147 = scalar_lea.vmem [#allocation8], %s146
          %s148 = sld [smem:[#allocation5 + %s37]]
          %s150 = ssub.s32 192, 192
          %151 = vsyncadd %s144, %s150
          %s152 = smul.addr %s148, 12
          %s153 = smul.addr %s152, 16
          %s154 = scalar_lea.hbm %s4, %s153
          %s156 = sshll.u32 %s147, 4
          %s157 = int_to_ptr.vmem [resolvable:$true] %s156
          %159 = dma.hbm_to_vmem [thread:$0]  %s154, 192, %s157, %s144
        $region20: #{tpu_custom_call.1} parent=15 // pred_fallthru
          _
        // Predicated region
        $region21: #{tpu_custom_call.1} parent=15 // pred_check
          %p160 = pneg %p87
        $region22: #{tpu_custom_call.1} parent=15 // pred_check_branch
          %162 = sbr.rel (%p160) target = $region24
        $region23: #{tpu_custom_call.1} parent=15 // pred_region
          %s163 = sand.u32 %s77, 1
          %s164 = scalar_lea.sflag [#allocation12], %s163
          %s165 = sand.u32 %s77, 1
          %s166 = smul.addr %s165, 192
          %s167 = scalar_lea.vmem [#allocation11], %s166
          %s168 = sld [smem:[#allocation5 + %s37]]
          %s169 = smul.u32 12, %s168
          %s171 = ssub.s32 3072, 3072
          %172 = vsyncadd %s164, %s171
          %s173 = smul.addr %s169, 128
          %s174 = scalar_lea.hbm %s5, %s173
          %s175 = sshll.u32 %s167, 4
          %s176 = int_to_ptr.vmem [resolvable:$true] %s175
          %181 = dma.hbm_to_vmem [thread:$0]  %s174, 3072, %s176, %s164, 3072, 1536, 96
        $region24: #{tpu_custom_call.1} parent=15 // pred_fallthru
          _
      $region16: #{tpu_custom_call.1} parent=5 // pred_fallthru
        _
      %p182 = scmp.le.s32.totalorder 1, %s37
      %p183 = scmp.lt.s32.totalorder %s37, 4
      %p184 = pnand %p182, %p183
      %p185 = pneg %p184
      // Predicated region
      $region25: #{tpu_custom_call.1} parent=5 // pred_check
        _
      $region26: #{tpu_custom_call.1} parent=5 // pred_check_branch
        %187 = sbr.rel (%p184) target = $region28
      $region27: #{tpu_custom_call.1} parent=5 // pred_region
        %s188 = ssub.s32 %s37, 1
        %s189 = sand.u32 %s52, 1
        %s190 = scalar_lea.sflag [#allocation9], %s189
        %s191 = sand.u32 %s52, 1
        %s192 = smul.addr %s191, 12
        %s193 = scalar_lea.vmem [#allocation8], %s192
        // Predicated region
        $region29: #{tpu_custom_call.1} parent=27 // pred_check
          %p194 = pneg %p65
        $region30: #{tpu_custom_call.1} parent=27 // pred_check_branch
          %196 = sbr.rel (%p194) target = $region32
        $region31: #{tpu_custom_call.1} parent=27 // pred_region
          %197 = dma.done %s190, 192
        $region32: #{tpu_custom_call.1} parent=27 // pred_fallthru
          _
        %s198 = sand.u32 %s80, 1
        %s199 = scalar_lea.sflag [#allocation12], %s198
        %s200 = sand.u32 %s80, 1
        %s201 = smul.addr %s200, 192
        %s202 = scalar_lea.vmem [#allocation11], %s201
        // Predicated region
        $region33: #{tpu_custom_call.1} parent=27 // pred_check
          %p203 = pneg %p93
        $region34: #{tpu_custom_call.1} parent=27 // pred_check_branch
          %205 = sbr.rel (%p203) target = $region36
        $region35: #{tpu_custom_call.1} parent=27 // pred_region
          %206 = dma.done %s199, 3072
        $region36: #{tpu_custom_call.1} parent=27 // pred_fallthru
          _
        %s207 = sand.u32 %s52, 1
        %s208 = scalar_lea.sflag [#allocation9], %s207
        %s209 = sand.u32 %s52, 1
        %s210 = smul.addr %s209, 12
        %s211 = scalar_lea.vmem [#allocation8], %s210
        %p212 = pneg %p65
        %p213 = pneg %p62
        %s214 = sand.u32 %s80, 1
        %s215 = scalar_lea.sflag [#allocation12], %s214
        %s216 = sand.u32 %s80, 1
        %s217 = smul.addr %s216, 192
        %s218 = scalar_lea.vmem [#allocation11], %s217
        %p219 = pneg %p93
        %p220 = pneg %p90
        %p221 = pneg %p121
        %p222 = pneg %p118
        %s223 = sand.u32 %s108, 1
        %s224 = scalar_lea.sflag [#allocation10], %s223
        %s225 = sand.u32 %s108, 1
        %s226 = smul.addr %s225, 32
        %s227 = scalar_lea.vmem [#allocation13], %s226
        %s228 = sld [smem:[#allocation5 + %s42]]
        %s229 = sld [smem:[#allocation5 + %s42]]
        %s230 = smul.u32 12, %s229
        %s231 = sld [smem:[#allocation4 + %s42]]
        %s232 = smul.u32 2, %s231
        %s233 = sld [smem:[#allocation6 + %s42]]
        %p234 = scmp.eq.s32.totalorder %s233, 1
        // Predicated region
        $region37: #{tpu_custom_call.1} parent=27 // pred_check
          %p235 = pneg %p234
        $region38: #{tpu_custom_call.1} parent=27 // pred_check_branch
          %237 = sbr.rel (%p235) target = $region40
        $region39: #{tpu_custom_call.1} parent=27 // pred_region
          %238 = vst [vmem:[#allocation2] sm:$0xff] 0.0
          %239 = vst [vmem:[#allocation2 + $0x8] sm:$0xff] 0.0
          %240 = vst [vmem:[#allocation2 + $0x10] sm:$0xff] 0.0
          %241 = vst [vmem:[#allocation2 + $0x18] sm:$0xff] 0.0
        $region40: #{tpu_custom_call.1} parent=27 // pred_fallthru
          _
        %v242 = vld [vmem:[%s193] sm:$0xff]
        %v243 = vld [vmem:[%s193 + $0x8] sm:$0xf]
        %s244 = sld [smem:[#allocation4 + %s42]]
        %s245 = smul.u32 %s244, 256
        %v246 = vstv %s245
        %v247 = vsub.s32 %v242, %v246
        %v248 = vsub.s32 %v243, %v246
        %v249 = vlaneseq
        %v250 = vshrl.u32 %v249, 7
        %v251 = vadd.s32 %v250, 8
        %v252 = vadd.s32 %v250, 16
        %v253 = vadd.s32 %v250, 24
        %v254 = vadd.s32 %v250, 32
        %v255 = vadd.s32 %v250, 40
        %v256 = vadd.s32 %v250, 48
        %v257 = vadd.s32 %v250, 56
        %v258 = vadd.s32 %v250, 64
        %v259 = vadd.s32 %v250, 72
        %v260 = vadd.s32 %v250, 80
        %v261 = vadd.s32 %v250, 88
        %v262 = vadd.s32 %v250, 96
        %v263 = vadd.s32 %v250, 104
        %v264 = vadd.s32 %v250, 112
        %v265 = vadd.s32 %v250, 120
        %v266 = vadd.s32 %v250, 128
        %v267 = vadd.s32 %v250, 136
        %v268 = vadd.s32 %v250, 144
        %v269 = vadd.s32 %v250, 152
        %v270 = vadd.s32 %v250, 160
        %v271 = vadd.s32 %v250, 168
        %v272 = vadd.s32 %v250, 176
        %v273 = vadd.s32 %v250, 184
        %v274 = vadd.s32 %v250, 192
        %v275 = vadd.s32 %v250, 200
        %v276 = vadd.s32 %v250, 208
        %v277 = vadd.s32 %v250, 216
        %v278 = vadd.s32 %v250, 224
        %v279 = vadd.s32 %v250, 232
        %v280 = vadd.s32 %v250, 240
        %v281 = vadd.s32 %v250, 248
        %v282 = vlaneseq
        %v283 = vshrl.u32 %v282, 7
        %v284 = vsub.s32 0, %v283
        %v285 = vrot.slane %v247, %v284
        %v286 = vlaneseq
        %v287 = vshrl.u32 %v286, 7
        %v288 = vsub.s32 1, %v287
        %v289 = vrot.slane %v247, %v288
        %v290 = vlaneseq
        %v291 = vshrl.u32 %v290, 7
        %v292 = vsub.s32 2, %v291
        %v293 = vrot.slane %v247, %v292
        %v294 = vlaneseq
        %v295 = vshrl.u32 %v294, 7
        %v296 = vsub.s32 3, %v295
        %v297 = vrot.slane %v247, %v296
        %v298 = vlaneseq
        %v299 = vshrl.u32 %v298, 7
        %v300 = vsub.s32 4, %v299
        %v301 = vrot.slane %v247, %v300
        %v302 = vlaneseq
        %v303 = vshrl.u32 %v302, 7
        %v304 = vsub.s32 5, %v303
        %v305 = vrot.slane %v247, %v304
        %v306 = vlaneseq
        %v307 = vshrl.u32 %v306, 7
        %v308 = vsub.s32 6, %v307
        %v309 = vrot.slane %v247, %v308
        %v310 = vlaneseq
        %v311 = vshrl.u32 %v310, 7
        %v312 = vsub.s32 7, %v311
        %v313 = vrot.slane %v247, %v312
        %v314 = vlaneseq
        %v315 = vshrl.u32 %v314, 7
        %v316 = vsub.s32 0, %v315
        %v317 = vrot.slane %v248, %v316
        %v318 = vlaneseq
        %v319 = vshrl.u32 %v318, 7
        %v320 = vsub.s32 1, %v319
        %v321 = vrot.slane %v248, %v320
        %v322 = vlaneseq
        %v323 = vshrl.u32 %v322, 7
        %v324 = vsub.s32 2, %v323
        %v325 = vrot.slane %v248, %v324
        %v326 = vlaneseq
        %v327 = vshrl.u32 %v326, 7
        %v328 = vsub.s32 3, %v327
        %v329 = vrot.slane %v248, %v328
        %vm330 = vcmp.eq.s32.totalorder %v250, %v285
        %vm331 = vcmp.eq.s32.totalorder %v250, %v289
        %vm332 = vcmp.eq.s32.totalorder %v250, %v293
        %vm333 = vcmp.eq.s32.totalorder %v250, %v297
        %vm334 = vcmp.eq.s32.totalorder %v250, %v301
        %vm335 = vcmp.eq.s32.totalorder %v250, %v305
        %vm336 = vcmp.eq.s32.totalorder %v250, %v309
        %vm337 = vcmp.eq.s32.totalorder %v250, %v313
        %vm338 = vcmp.eq.s32.totalorder %v250, %v317
        %vm339 = vcmp.eq.s32.totalorder %v250, %v321
        %vm340 = vcmp.eq.s32.totalorder %v250, %v325
        %vm341 = vcmp.eq.s32.totalorder %v250, %v329
        %vm342 = vcmp.eq.s32.totalorder %v251, %v285
        %vm343 = vcmp.eq.s32.totalorder %v251, %v289
        %vm344 = vcmp.eq.s32.totalorder %v251, %v293
        %vm345 = vcmp.eq.s32.totalorder %v251, %v297
        %vm346 = vcmp.eq.s32.totalorder %v251, %v301
        %vm347 = vcmp.eq.s32.totalorder %v251, %v305
        %vm348 = vcmp.eq.s32.totalorder %v251, %v309
        %vm349 = vcmp.eq.s32.totalorder %v251, %v313
        %vm350 = vcmp.eq.s32.totalorder %v251, %v317
        %vm351 = vcmp.eq.s32.totalorder %v251, %v321
        %vm352 = vcmp.eq.s32.totalorder %v251, %v325
        %vm353 = vcmp.eq.s32.totalorder %v251, %v329
        %vm354 = vcmp.eq.s32.totalorder %v252, %v285
        %vm355 = vcmp.eq.s32.totalorder %v252, %v289
        %vm356 = vcmp.eq.s32.totalorder %v252, %v293
        %vm357 = vcmp.eq.s32.totalorder %v252, %v297
        %vm358 = vcmp.eq.s32.totalorder %v252, %v301
        %vm359 = vcmp.eq.s32.totalorder %v252, %v305
        %vm360 = vcmp.eq.s32.totalorder %v252, %v309
        %vm361 = vcmp.eq.s32.totalorder %v252, %v313
        %vm362 = vcmp.eq.s32.totalorder %v252, %v317
        %vm363 = vcmp.eq.s32.totalorder %v252, %v321
        %vm364 = vcmp.eq.s32.totalorder %v252, %v325
        %vm365 = vcmp.eq.s32.totalorder %v252, %v329
        %vm366 = vcmp.eq.s32.totalorder %v253, %v285
        %vm367 = vcmp.eq.s32.totalorder %v253, %v289
        %vm368 = vcmp.eq.s32.totalorder %v253, %v293
        %vm369 = vcmp.eq.s32.totalorder %v253, %v297
        %vm370 = vcmp.eq.s32.totalorder %v253, %v301
        %vm371 = vcmp.eq.s32.totalorder %v253, %v305
        %vm372 = vcmp.eq.s32.totalorder %v253, %v309
        %vm373 = vcmp.eq.s32.totalorder %v253, %v313
        %vm374 = vcmp.eq.s32.totalorder %v253, %v317
        %vm375 = vcmp.eq.s32.totalorder %v253, %v321
        %vm376 = vcmp.eq.s32.totalorder %v253, %v325
        %vm377 = vcmp.eq.s32.totalorder %v253, %v329
        %vm378 = vcmp.eq.s32.totalorder %v254, %v285
        %vm379 = vcmp.eq.s32.totalorder %v254, %v289
        %vm380 = vcmp.eq.s32.totalorder %v254, %v293
        %vm381 = vcmp.eq.s32.totalorder %v254, %v297
        %vm382 = vcmp.eq.s32.totalorder %v254, %v301
        %vm383 = vcmp.eq.s32.totalorder %v254, %v305
        %vm384 = vcmp.eq.s32.totalorder %v254, %v309
        %vm385 = vcmp.eq.s32.totalorder %v254, %v313
        %vm386 = vcmp.eq.s32.totalorder %v254, %v317
        %vm387 = vcmp.eq.s32.totalorder %v254, %v321
        %vm388 = vcmp.eq.s32.totalorder %v254, %v325
        %vm389 = vcmp.eq.s32.totalorder %v254, %v329
        %vm390 = vcmp.eq.s32.totalorder %v255, %v285
        %vm391 = vcmp.eq.s32.totalorder %v255, %v289
        %vm392 = vcmp.eq.s32.totalorder %v255, %v293
        %vm393 = vcmp.eq.s32.totalorder %v255, %v297
        %vm394 = vcmp.eq.s32.totalorder %v255, %v301
        %vm395 = vcmp.eq.s32.totalorder %v255, %v305
        %vm396 = vcmp.eq.s32.totalorder %v255, %v309
        %vm397 = vcmp.eq.s32.totalorder %v255, %v313
        %vm398 = vcmp.eq.s32.totalorder %v255, %v317
        %vm399 = vcmp.eq.s32.totalorder %v255, %v321
        %vm400 = vcmp.eq.s32.totalorder %v255, %v325
        %vm401 = vcmp.eq.s32.totalorder %v255, %v329
        %vm402 = vcmp.eq.s32.totalorder %v256, %v285
        %vm403 = vcmp.eq.s32.totalorder %v256, %v289
        %vm404 = vcmp.eq.s32.totalorder %v256, %v293
        %vm405 = vcmp.eq.s32.totalorder %v256, %v297
        %vm406 = vcmp.eq.s32.totalorder %v256, %v301
        %vm407 = vcmp.eq.s32.totalorder %v256, %v305
        %vm408 = vcmp.eq.s32.totalorder %v256, %v309
        %vm409 = vcmp.eq.s32.totalorder %v256, %v313
        %vm410 = vcmp.eq.s32.totalorder %v256, %v317
        %vm411 = vcmp.eq.s32.totalorder %v256, %v321
        %vm412 = vcmp.eq.s32.totalorder %v256, %v325
        %vm413 = vcmp.eq.s32.totalorder %v256, %v329
        %vm414 = vcmp.eq.s32.totalorder %v257, %v285
        %vm415 = vcmp.eq.s32.totalorder %v257, %v289
        %vm416 = vcmp.eq.s32.totalorder %v257, %v293
        %vm417 = vcmp.eq.s32.totalorder %v257, %v297
        %vm418 = vcmp.eq.s32.totalorder %v257, %v301
        %vm419 = vcmp.eq.s32.totalorder %v257, %v305
        %vm420 = vcmp.eq.s32.totalorder %v257, %v309
        %vm421 = vcmp.eq.s32.totalorder %v257, %v313
        %vm422 = vcmp.eq.s32.totalorder %v257, %v317
        %vm423 = vcmp.eq.s32.totalorder %v257, %v321
        %vm424 = vcmp.eq.s32.totalorder %v257, %v325
        %vm425 = vcmp.eq.s32.totalorder %v257, %v329
        %vm426 = vcmp.eq.s32.totalorder %v258, %v285
        %vm427 = vcmp.eq.s32.totalorder %v258, %v289
        %vm428 = vcmp.eq.s32.totalorder %v258, %v293
        %vm429 = vcmp.eq.s32.totalorder %v258, %v297
        %vm430 = vcmp.eq.s32.totalorder %v258, %v301
        %vm431 = vcmp.eq.s32.totalorder %v258, %v305
        %vm432 = vcmp.eq.s32.totalorder %v258, %v309
        %vm433 = vcmp.eq.s32.totalorder %v258, %v313
        %vm434 = vcmp.eq.s32.totalorder %v258, %v317
        %vm435 = vcmp.eq.s32.totalorder %v258, %v321
        %vm436 = vcmp.eq.s32.totalorder %v258, %v325
        %vm437 = vcmp.eq.s32.totalorder %v258, %v329
        %vm438 = vcmp.eq.s32.totalorder %v259, %v285
        %vm439 = vcmp.eq.s32.totalorder %v259, %v289
        %vm440 = vcmp.eq.s32.totalorder %v259, %v293
        %vm441 = vcmp.eq.s32.totalorder %v259, %v297
        %vm442 = vcmp.eq.s32.totalorder %v259, %v301
        %vm443 = vcmp.eq.s32.totalorder %v259, %v305
        %vm444 = vcmp.eq.s32.totalorder %v259, %v309
        %vm445 = vcmp.eq.s32.totalorder %v259, %v313
        %vm446 = vcmp.eq.s32.totalorder %v259, %v317
        %vm447 = vcmp.eq.s32.totalorder %v259, %v321
        %vm448 = vcmp.eq.s32.totalorder %v259, %v325
        %vm449 = vcmp.eq.s32.totalorder %v259, %v329
        %vm450 = vcmp.eq.s32.totalorder %v260, %v285
        %vm451 = vcmp.eq.s32.totalorder %v260, %v289
        %vm452 = vcmp.eq.s32.totalorder %v260, %v293
        %vm453 = vcmp.eq.s32.totalorder %v260, %v297
        %vm454 = vcmp.eq.s32.totalorder %v260, %v301
        %vm455 = vcmp.eq.s32.totalorder %v260, %v305
        %vm456 = vcmp.eq.s32.totalorder %v260, %v309
        %vm457 = vcmp.eq.s32.totalorder %v260, %v313
        %vm458 = vcmp.eq.s32.totalorder %v260, %v317
        %vm459 = vcmp.eq.s32.totalorder %v260, %v321
        %vm460 = vcmp.eq.s32.totalorder %v260, %v325
        %vm461 = vcmp.eq.s32.totalorder %v260, %v329
        %vm462 = vcmp.eq.s32.totalorder %v261, %v285
        %vm463 = vcmp.eq.s32.totalorder %v261, %v289
        %vm464 = vcmp.eq.s32.totalorder %v261, %v293
        %vm465 = vcmp.eq.s32.totalorder %v261, %v297
        %vm466 = vcmp.eq.s32.totalorder %v261, %v301
        %vm467 = vcmp.eq.s32.totalorder %v261, %v305
        %vm468 = vcmp.eq.s32.totalorder %v261, %v309
        %vm469 = vcmp.eq.s32.totalorder %v261, %v313
        %vm470 = vcmp.eq.s32.totalorder %v261, %v317
        %vm471 = vcmp.eq.s32.totalorder %v261, %v321
        %vm472 = vcmp.eq.s32.totalorder %v261, %v325
        %vm473 = vcmp.eq.s32.totalorder %v261, %v329
        %vm474 = vcmp.eq.s32.totalorder %v262, %v285
        %vm475 = vcmp.eq.s32.totalorder %v262, %v289
        %vm476 = vcmp.eq.s32.totalorder %v262, %v293
        %vm477 = vcmp.eq.s32.totalorder %v262, %v297
        %vm478 = vcmp.eq.s32.totalorder %v262, %v301
        %vm479 = vcmp.eq.s32.totalorder %v262, %v305
        %vm480 = vcmp.eq.s32.totalorder %v262, %v309
        %vm481 = vcmp.eq.s32.totalorder %v262, %v313
        %vm482 = vcmp.eq.s32.totalorder %v262, %v317
        %vm483 = vcmp.eq.s32.totalorder %v262, %v321
        %vm484 = vcmp.eq.s32.totalorder %v262, %v325
        %vm485 = vcmp.eq.s32.totalorder %v262, %v329
        %vm486 = vcmp.eq.s32.totalorder %v263, %v285
        %vm487 = vcmp.eq.s32.totalorder %v263, %v289
        %vm488 = vcmp.eq.s32.totalorder %v263, %v293
        %vm489 = vcmp.eq.s32.totalorder %v263, %v297
        %vm490 = vcmp.eq.s32.totalorder %v263, %v301
        %vm491 = vcmp.eq.s32.totalorder %v263, %v305
        %vm492 = vcmp.eq.s32.totalorder %v263, %v309
        %vm493 = vcmp.eq.s32.totalorder %v263, %v313
        %vm494 = vcmp.eq.s32.totalorder %v263, %v317
        %vm495 = vcmp.eq.s32.totalorder %v263, %v321
        %vm496 = vcmp.eq.s32.totalorder %v263, %v325
        %vm497 = vcmp.eq.s32.totalorder %v263, %v329
        %vm498 = vcmp.eq.s32.totalorder %v264, %v285
        %vm499 = vcmp.eq.s32.totalorder %v264, %v289
        %vm500 = vcmp.eq.s32.totalorder %v264, %v293
        %vm501 = vcmp.eq.s32.totalorder %v264, %v297
        %vm502 = vcmp.eq.s32.totalorder %v264, %v301
        %vm503 = vcmp.eq.s32.totalorder %v264, %v305
        %vm504 = vcmp.eq.s32.totalorder %v264, %v309
        %vm505 = vcmp.eq.s32.totalorder %v264, %v313
        %vm506 = vcmp.eq.s32.totalorder %v264, %v317
        %vm507 = vcmp.eq.s32.totalorder %v264, %v321
        %vm508 = vcmp.eq.s32.totalorder %v264, %v325
        %vm509 = vcmp.eq.s32.totalorder %v264, %v329
        %vm510 = vcmp.eq.s32.totalorder %v265, %v285
        %vm511 = vcmp.eq.s32.totalorder %v265, %v289
        %vm512 = vcmp.eq.s32.totalorder %v265, %v293
        %vm513 = vcmp.eq.s32.totalorder %v265, %v297
        %vm514 = vcmp.eq.s32.totalorder %v265, %v301
        %vm515 = vcmp.eq.s32.totalorder %v265, %v305
        %vm516 = vcmp.eq.s32.totalorder %v265, %v309
        %vm517 = vcmp.eq.s32.totalorder %v265, %v313
        %vm518 = vcmp.eq.s32.totalorder %v265, %v317
        %vm519 = vcmp.eq.s32.totalorder %v265, %v321
        %vm520 = vcmp.eq.s32.totalorder %v265, %v325
        %vm521 = vcmp.eq.s32.totalorder %v265, %v329
        %vm522 = vcmp.eq.s32.totalorder %v266, %v285
        %vm523 = vcmp.eq.s32.totalorder %v266, %v289
        %vm524 = vcmp.eq.s32.totalorder %v266, %v293
        %vm525 = vcmp.eq.s32.totalorder %v266, %v297
        %vm526 = vcmp.eq.s32.totalorder %v266, %v301
        %vm527 = vcmp.eq.s32.totalorder %v266, %v305
        %vm528 = vcmp.eq.s32.totalorder %v266, %v309
        %vm529 = vcmp.eq.s32.totalorder %v266, %v313
        %vm530 = vcmp.eq.s32.totalorder %v266, %v317
        %vm531 = vcmp.eq.s32.totalorder %v266, %v321
        %vm532 = vcmp.eq.s32.totalorder %v266, %v325
        %vm533 = vcmp.eq.s32.totalorder %v266, %v329
        %vm534 = vcmp.eq.s32.totalorder %v267, %v285
        %vm535 = vcmp.eq.s32.totalorder %v267, %v289
        %vm536 = vcmp.eq.s32.totalorder %v267, %v293
        %vm537 = vcmp.eq.s32.totalorder %v267, %v297
        %vm538 = vcmp.eq.s32.totalorder %v267, %v301
        %vm539 = vcmp.eq.s32.totalorder %v267, %v305
        %vm540 = vcmp.eq.s32.totalorder %v267, %v309
        %vm541 = vcmp.eq.s32.totalorder %v267, %v313
        %vm542 = vcmp.eq.s32.totalorder %v267, %v317
        %vm543 = vcmp.eq.s32.totalorder %v267, %v321
        %vm544 = vcmp.eq.s32.totalorder %v267, %v325
        %vm545 = vcmp.eq.s32.totalorder %v267, %v329
        %vm546 = vcmp.eq.s32.totalorder %v268, %v285
        %vm547 = vcmp.eq.s32.totalorder %v268, %v289
        %vm548 = vcmp.eq.s32.totalorder %v268, %v293
        %vm549 = vcmp.eq.s32.totalorder %v268, %v297
        %vm550 = vcmp.eq.s32.totalorder %v268, %v301
        %vm551 = vcmp.eq.s32.totalorder %v268, %v305
        %vm552 = vcmp.eq.s32.totalorder %v268, %v309
        %vm553 = vcmp.eq.s32.totalorder %v268, %v313
        %vm554 = vcmp.eq.s32.totalorder %v268, %v317
        %vm555 = vcmp.eq.s32.totalorder %v268, %v321
        %vm556 = vcmp.eq.s32.totalorder %v268, %v325
        %vm557 = vcmp.eq.s32.totalorder %v268, %v329
        %vm558 = vcmp.eq.s32.totalorder %v269, %v285
        %vm559 = vcmp.eq.s32.totalorder %v269, %v289
        %vm560 = vcmp.eq.s32.totalorder %v269, %v293
        %vm561 = vcmp.eq.s32.totalorder %v269, %v297
        %vm562 = vcmp.eq.s32.totalorder %v269, %v301
        %vm563 = vcmp.eq.s32.totalorder %v269, %v305
        %vm564 = vcmp.eq.s32.totalorder %v269, %v309
        %vm565 = vcmp.eq.s32.totalorder %v269, %v313
        %vm566 = vcmp.eq.s32.totalorder %v269, %v317
        %vm567 = vcmp.eq.s32.totalorder %v269, %v321
        %vm568 = vcmp.eq.s32.totalorder %v269, %v325
        %vm569 = vcmp.eq.s32.totalorder %v269, %v329
        %vm570 = vcmp.eq.s32.totalorder %v270, %v285
        %vm571 = vcmp.eq.s32.totalorder %v270, %v289
        %vm572 = vcmp.eq.s32.totalorder %v270, %v293
        %vm573 = vcmp.eq.s32.totalorder %v270, %v297
        %vm574 = vcmp.eq.s32.totalorder %v270, %v301
        %vm575 = vcmp.eq.s32.totalorder %v270, %v305
        %vm576 = vcmp.eq.s32.totalorder %v270, %v309
        %vm577 = vcmp.eq.s32.totalorder %v270, %v313
        %vm578 = vcmp.eq.s32.totalorder %v270, %v317
        %vm579 = vcmp.eq.s32.totalorder %v270, %v321
        %vm580 = vcmp.eq.s32.totalorder %v270, %v325
        %vm581 = vcmp.eq.s32.totalorder %v270, %v329
        %vm582 = vcmp.eq.s32.totalorder %v271, %v285
        %vm583 = vcmp.eq.s32.totalorder %v271, %v289
        %vm584 = vcmp.eq.s32.totalorder %v271, %v293
        %vm585 = vcmp.eq.s32.totalorder %v271, %v297
        %vm586 = vcmp.eq.s32.totalorder %v271, %v301
        %vm587 = vcmp.eq.s32.totalorder %v271, %v305
        %vm588 = vcmp.eq.s32.totalorder %v271, %v309
        %vm589 = vcmp.eq.s32.totalorder %v271, %v313
        %vm590 = vcmp.eq.s32.totalorder %v271, %v317
        %vm591 = vcmp.eq.s32.totalorder %v271, %v321
        %vm592 = vcmp.eq.s32.totalorder %v271, %v325
        %vm593 = vcmp.eq.s32.totalorder %v271, %v329
        %vm594 = vcmp.eq.s32.totalorder %v272, %v285
        %vm595 = vcmp.eq.s32.totalorder %v272, %v289
        %vm596 = vcmp.eq.s32.totalorder %v272, %v293
        %vm597 = vcmp.eq.s32.totalorder %v272, %v297
        %vm598 = vcmp.eq.s32.totalorder %v272, %v301
        %vm599 = vcmp.eq.s32.totalorder %v272, %v305
        %vm600 = vcmp.eq.s32.totalorder %v272, %v309
        %vm601 = vcmp.eq.s32.totalorder %v272, %v313
        %vm602 = vcmp.eq.s32.totalorder %v272, %v317
        %vm603 = vcmp.eq.s32.totalorder %v272, %v321
        %vm604 = vcmp.eq.s32.totalorder %v272, %v325
        %vm605 = vcmp.eq.s32.totalorder %v272, %v329
        %vm606 = vcmp.eq.s32.totalorder %v273, %v285
        %vm607 = vcmp.eq.s32.totalorder %v273, %v289
        %vm608 = vcmp.eq.s32.totalorder %v273, %v293
        %vm609 = vcmp.eq.s32.totalorder %v273, %v297
        %vm610 = vcmp.eq.s32.totalorder %v273, %v301
        %vm611 = vcmp.eq.s32.totalorder %v273, %v305
        %vm612 = vcmp.eq.s32.totalorder %v273, %v309
        %vm613 = vcmp.eq.s32.totalorder %v273, %v313
        %vm614 = vcmp.eq.s32.totalorder %v273, %v317
        %vm615 = vcmp.eq.s32.totalorder %v273, %v321
        %vm616 = vcmp.eq.s32.totalorder %v273, %v325
        %vm617 = vcmp.eq.s32.totalorder %v273, %v329
        %vm618 = vcmp.eq.s32.totalorder %v274, %v285
        %vm619 = vcmp.eq.s32.totalorder %v274, %v289
        %vm620 = vcmp.eq.s32.totalorder %v274, %v293
        %vm621 = vcmp.eq.s32.totalorder %v274, %v297
        %vm622 = vcmp.eq.s32.totalorder %v274, %v301
        %vm623 = vcmp.eq.s32.totalorder %v274, %v305
        %vm624 = vcmp.eq.s32.totalorder %v274, %v309
        %vm625 = vcmp.eq.s32.totalorder %v274, %v313
        %vm626 = vcmp.eq.s32.totalorder %v274, %v317
        %vm627 = vcmp.eq.s32.totalorder %v274, %v321
        %vm628 = vcmp.eq.s32.totalorder %v274, %v325
        %vm629 = vcmp.eq.s32.totalorder %v274, %v329
        %vm630 = vcmp.eq.s32.totalorder %v275, %v285
        %vm631 = vcmp.eq.s32.totalorder %v275, %v289
        %vm632 = vcmp.eq.s32.totalorder %v275, %v293
        %vm633 = vcmp.eq.s32.totalorder %v275, %v297
        %vm634 = vcmp.eq.s32.totalorder %v275, %v301
        %vm635 = vcmp.eq.s32.totalorder %v275, %v305
        %vm636 = vcmp.eq.s32.totalorder %v275, %v309
        %vm637 = vcmp.eq.s32.totalorder %v275, %v313
        %vm638 = vcmp.eq.s32.totalorder %v275, %v317
        %vm639 = vcmp.eq.s32.totalorder %v275, %v321
        %vm640 = vcmp.eq.s32.totalorder %v275, %v325
        %vm641 = vcmp.eq.s32.totalorder %v275, %v329
        %vm642 = vcmp.eq.s32.totalorder %v276, %v285
        %vm643 = vcmp.eq.s32.totalorder %v276, %v289
        %vm644 = vcmp.eq.s32.totalorder %v276, %v293
        %vm645 = vcmp.eq.s32.totalorder %v276, %v297
        %vm646 = vcmp.eq.s32.totalorder %v276, %v301
        %vm647 = vcmp.eq.s32.totalorder %v276, %v305
        %vm648 = vcmp.eq.s32.totalorder %v276, %v309
        %vm649 = vcmp.eq.s32.totalorder %v276, %v313
        %vm650 = vcmp.eq.s32.totalorder %v276, %v317
        %vm651 = vcmp.eq.s32.totalorder %v276, %v321
        %vm652 = vcmp.eq.s32.totalorder %v276, %v325
        %vm653 = vcmp.eq.s32.totalorder %v276, %v329
        %vm654 = vcmp.eq.s32.totalorder %v277, %v285
        %vm655 = vcmp.eq.s32.totalorder %v277, %v289
        %vm656 = vcmp.eq.s32.totalorder %v277, %v293
        %vm657 = vcmp.eq.s32.totalorder %v277, %v297
        %vm658 = vcmp.eq.s32.totalorder %v277, %v301
        %vm659 = vcmp.eq.s32.totalorder %v277, %v305
        %vm660 = vcmp.eq.s32.totalorder %v277, %v309
        %vm661 = vcmp.eq.s32.totalorder %v277, %v313
        %vm662 = vcmp.eq.s32.totalorder %v277, %v317
        %vm663 = vcmp.eq.s32.totalorder %v277, %v321
        %vm664 = vcmp.eq.s32.totalorder %v277, %v325
        %vm665 = vcmp.eq.s32.totalorder %v277, %v329
        %vm666 = vcmp.eq.s32.totalorder %v278, %v285
        %vm667 = vcmp.eq.s32.totalorder %v278, %v289
        %vm668 = vcmp.eq.s32.totalorder %v278, %v293
        %vm669 = vcmp.eq.s32.totalorder %v278, %v297
        %vm670 = vcmp.eq.s32.totalorder %v278, %v301
        %vm671 = vcmp.eq.s32.totalorder %v278, %v305
        %vm672 = vcmp.eq.s32.totalorder %v278, %v309
        %vm673 = vcmp.eq.s32.totalorder %v278, %v313
        %vm674 = vcmp.eq.s32.totalorder %v278, %v317
        %vm675 = vcmp.eq.s32.totalorder %v278, %v321
        %vm676 = vcmp.eq.s32.totalorder %v278, %v325
        %vm677 = vcmp.eq.s32.totalorder %v278, %v329
        %vm678 = vcmp.eq.s32.totalorder %v279, %v285
        %vm679 = vcmp.eq.s32.totalorder %v279, %v289
        %vm680 = vcmp.eq.s32.totalorder %v279, %v293
        %vm681 = vcmp.eq.s32.totalorder %v279, %v297
        %vm682 = vcmp.eq.s32.totalorder %v279, %v301
        %vm683 = vcmp.eq.s32.totalorder %v279, %v305
        %vm684 = vcmp.eq.s32.totalorder %v279, %v309
        %vm685 = vcmp.eq.s32.totalorder %v279, %v313
        %vm686 = vcmp.eq.s32.totalorder %v279, %v317
        %vm687 = vcmp.eq.s32.totalorder %v279, %v321
        %vm688 = vcmp.eq.s32.totalorder %v279, %v325
        %vm689 = vcmp.eq.s32.totalorder %v279, %v329
        %vm690 = vcmp.eq.s32.totalorder %v280, %v285
        %vm691 = vcmp.eq.s32.totalorder %v280, %v289
        %vm692 = vcmp.eq.s32.totalorder %v280, %v293
        %vm693 = vcmp.eq.s32.totalorder %v280, %v297
        %vm694 = vcmp.eq.s32.totalorder %v280, %v301
        %vm695 = vcmp.eq.s32.totalorder %v280, %v305
        %vm696 = vcmp.eq.s32.totalorder %v280, %v309
        %vm697 = vcmp.eq.s32.totalorder %v280, %v313
        %vm698 = vcmp.eq.s32.totalorder %v280, %v317
        %vm699 = vcmp.eq.s32.totalorder %v280, %v321
        %vm700 = vcmp.eq.s32.totalorder %v280, %v325
        %vm701 = vcmp.eq.s32.totalorder %v280, %v329
        %vm702 = vcmp.eq.s32.totalorder %v281, %v285
        %vm703 = vcmp.eq.s32.totalorder %v281, %v289
        %vm704 = vcmp.eq.s32.totalorder %v281, %v293
        %vm705 = vcmp.eq.s32.totalorder %v281, %v297
        %vm706 = vcmp.eq.s32.totalorder %v281, %v301
        %vm707 = vcmp.eq.s32.totalorder %v281, %v305
        %vm708 = vcmp.eq.s32.totalorder %v281, %v309
        %vm709 = vcmp.eq.s32.totalorder %v281, %v313
        %vm710 = vcmp.eq.s32.totalorder %v281, %v317
        %vm711 = vcmp.eq.s32.totalorder %v281, %v321
        %vm712 = vcmp.eq.s32.totalorder %v281, %v325
        %vm713 = vcmp.eq.s32.totalorder %v281, %v329
        %v714 = vsel %vm330, 1, 0
        %v715 = vsel %vm331, 1, 0
        %v716 = vsel %vm332, 1, 0
        %v717 = vsel %vm333, 1, 0
        %v718 = vsel %vm334, 1, 0
        %v719 = vsel %vm335, 1, 0
        %v720 = vsel %vm336, 1, 0
        %v721 = vsel %vm337, 1, 0
        %v722 = vsel %vm338, 1, 0
        %v723 = vsel %vm339, 1, 0
        %v724 = vsel %vm340, 1, 0
        %v725 = vsel %vm341, 1, 0
        %v726 = vsel %vm342, 1, 0
        %v727 = vsel %vm343, 1, 0
        %v728 = vsel %vm344, 1, 0
        %v729 = vsel %vm345, 1, 0
        %v730 = vsel %vm346, 1, 0
        %v731 = vsel %vm347, 1, 0
        %v732 = vsel %vm348, 1, 0
        %v733 = vsel %vm349, 1, 0
        %v734 = vsel %vm350, 1, 0
        %v735 = vsel %vm351, 1, 0
        %v736 = vsel %vm352, 1, 0
        %v737 = vsel %vm353, 1, 0
        %v738 = vsel %vm354, 1, 0
        %v739 = vsel %vm355, 1, 0
        %v740 = vsel %vm356, 1, 0
        %v741 = vsel %vm357, 1, 0
        %v742 = vsel %vm358, 1, 0
        %v743 = vsel %vm359, 1, 0
        %v744 = vsel %vm360, 1, 0
        %v745 = vsel %vm361, 1, 0
        %v746 = vsel %vm362, 1, 0
        %v747 = vsel %vm363, 1, 0
        %v748 = vsel %vm364, 1, 0
        %v749 = vsel %vm365, 1, 0
        %v750 = vsel %vm366, 1, 0
        %v751 = vsel %vm367, 1, 0
        %v752 = vsel %vm368, 1, 0
        %v753 = vsel %vm369, 1, 0
        %v754 = vsel %vm370, 1, 0
        %v755 = vsel %vm371, 1, 0
        %v756 = vsel %vm372, 1, 0
        %v757 = vsel %vm373, 1, 0
        %v758 = vsel %vm374, 1, 0
        %v759 = vsel %vm375, 1, 0
        %v760 = vsel %vm376, 1, 0
        %v761 = vsel %vm377, 1, 0
        %v762 = vsel %vm378, 1, 0
        %v763 = vsel %vm379, 1, 0
        %v764 = vsel %vm380, 1, 0
        %v765 = vsel %vm381, 1, 0
        %v766 = vsel %vm382, 1, 0
        %v767 = vsel %vm383, 1, 0
        %v768 = vsel %vm384, 1, 0
        %v769 = vsel %vm385, 1, 0
        %v770 = vsel %vm386, 1, 0
        %v771 = vsel %vm387, 1, 0
        %v772 = vsel %vm388, 1, 0
        %v773 = vsel %vm389, 1, 0
        %v774 = vsel %vm390, 1, 0
        %v775 = vsel %vm391, 1, 0
        %v776 = vsel %vm392, 1, 0
        %v777 = vsel %vm393, 1, 0
        %v778 = vsel %vm394, 1, 0
        %v779 = vsel %vm395, 1, 0
        %v780 = vsel %vm396, 1, 0
        %v781 = vsel %vm397, 1, 0
        %v782 = vsel %vm398, 1, 0
        %v783 = vsel %vm399, 1, 0
        %v784 = vsel %vm400, 1, 0
        %v785 = vsel %vm401, 1, 0
        %v786 = vsel %vm402, 1, 0
        %v787 = vsel %vm403, 1, 0
        %v788 = vsel %vm404, 1, 0
        %v789 = vsel %vm405, 1, 0
        %v790 = vsel %vm406, 1, 0
        %v791 = vsel %vm407, 1, 0
        %v792 = vsel %vm408, 1, 0
        %v793 = vsel %vm409, 1, 0
        %v794 = vsel %vm410, 1, 0
        %v795 = vsel %vm411, 1, 0
        %v796 = vsel %vm412, 1, 0
        %v797 = vsel %vm413, 1, 0
        %v798 = vsel %vm414, 1, 0
        %v799 = vsel %vm415, 1, 0
        %v800 = vsel %vm416, 1, 0
        %v801 = vsel %vm417, 1, 0
        %v802 = vsel %vm418, 1, 0
        %v803 = vsel %vm419, 1, 0
        %v804 = vsel %vm420, 1, 0
        %v805 = vsel %vm421, 1, 0
        %v806 = vsel %vm422, 1, 0
        %v807 = vsel %vm423, 1, 0
        %v808 = vsel %vm424, 1, 0
        %v809 = vsel %vm425, 1, 0
        %v810 = vsel %vm426, 1, 0
        %v811 = vsel %vm427, 1, 0
        %v812 = vsel %vm428, 1, 0
        %v813 = vsel %vm429, 1, 0
        %v814 = vsel %vm430, 1, 0
        %v815 = vsel %vm431, 1, 0
        %v816 = vsel %vm432, 1, 0
        %v817 = vsel %vm433, 1, 0
        %v818 = vsel %vm434, 1, 0
        %v819 = vsel %vm435, 1, 0
        %v820 = vsel %vm436, 1, 0
        %v821 = vsel %vm437, 1, 0
        %v822 = vsel %vm438, 1, 0
        %v823 = vsel %vm439, 1, 0
        %v824 = vsel %vm440, 1, 0
        %v825 = vsel %vm441, 1, 0
        %v826 = vsel %vm442, 1, 0
        %v827 = vsel %vm443, 1, 0
        %v828 = vsel %vm444, 1, 0
        %v829 = vsel %vm445, 1, 0
        %v830 = vsel %vm446, 1, 0
        %v831 = vsel %vm447, 1, 0
        %v832 = vsel %vm448, 1, 0
        %v833 = vsel %vm449, 1, 0
        %v834 = vsel %vm450, 1, 0
        %v835 = vsel %vm451, 1, 0
        %v836 = vsel %vm452, 1, 0
        %v837 = vsel %vm453, 1, 0
        %v838 = vsel %vm454, 1, 0
        %v839 = vsel %vm455, 1, 0
        %v840 = vsel %vm456, 1, 0
        %v841 = vsel %vm457, 1, 0
        %v842 = vsel %vm458, 1, 0
        %v843 = vsel %vm459, 1, 0
        %v844 = vsel %vm460, 1, 0
        %v845 = vsel %vm461, 1, 0
        %v846 = vsel %vm462, 1, 0
        %v847 = vsel %vm463, 1, 0
        %v848 = vsel %vm464, 1, 0
        %v849 = vsel %vm465, 1, 0
        %v850 = vsel %vm466, 1, 0
        %v851 = vsel %vm467, 1, 0
        %v852 = vsel %vm468, 1, 0
        %v853 = vsel %vm469, 1, 0
        %v854 = vsel %vm470, 1, 0
        %v855 = vsel %vm471, 1, 0
        %v856 = vsel %vm472, 1, 0
        %v857 = vsel %vm473, 1, 0
        %v858 = vsel %vm474, 1, 0
        %v859 = vsel %vm475, 1, 0
        %v860 = vsel %vm476, 1, 0
        %v861 = vsel %vm477, 1, 0
        %v862 = vsel %vm478, 1, 0
        %v863 = vsel %vm479, 1, 0
        %v864 = vsel %vm480, 1, 0
        %v865 = vsel %vm481, 1, 0
        %v866 = vsel %vm482, 1, 0
        %v867 = vsel %vm483, 1, 0
        %v868 = vsel %vm484, 1, 0
        %v869 = vsel %vm485, 1, 0
        %v870 = vsel %vm486, 1, 0
        %v871 = vsel %vm487, 1, 0
        %v872 = vsel %vm488, 1, 0
        %v873 = vsel %vm489, 1, 0
        %v874 = vsel %vm490, 1, 0
        %v875 = vsel %vm491, 1, 0
        %v876 = vsel %vm492, 1, 0
        %v877 = vsel %vm493, 1, 0
        %v878 = vsel %vm494, 1, 0
        %v879 = vsel %vm495, 1, 0
        %v880 = vsel %vm496, 1, 0
        %v881 = vsel %vm497, 1, 0
        %v882 = vsel %vm498, 1, 0
        %v883 = vsel %vm499, 1, 0
        %v884 = vsel %vm500, 1, 0
        %v885 = vsel %vm501, 1, 0
        %v886 = vsel %vm502, 1, 0
        %v887 = vsel %vm503, 1, 0
        %v888 = vsel %vm504, 1, 0
        %v889 = vsel %vm505, 1, 0
        %v890 = vsel %vm506, 1, 0
        %v891 = vsel %vm507, 1, 0
        %v892 = vsel %vm508, 1, 0
        %v893 = vsel %vm509, 1, 0
        %v894 = vsel %vm510, 1, 0
        %v895 = vsel %vm511, 1, 0
        %v896 = vsel %vm512, 1, 0
        %v897 = vsel %vm513, 1, 0
        %v898 = vsel %vm514, 1, 0
        %v899 = vsel %vm515, 1, 0
        %v900 = vsel %vm516, 1, 0
        %v901 = vsel %vm517, 1, 0
        %v902 = vsel %vm518, 1, 0
        %v903 = vsel %vm519, 1, 0
        %v904 = vsel %vm520, 1, 0
        %v905 = vsel %vm521, 1, 0
        %v906 = vsel %vm522, 1, 0
        %v907 = vsel %vm523, 1, 0
        %v908 = vsel %vm524, 1, 0
        %v909 = vsel %vm525, 1, 0
        %v910 = vsel %vm526, 1, 0
        %v911 = vsel %vm527, 1, 0
        %v912 = vsel %vm528, 1, 0
        %v913 = vsel %vm529, 1, 0
        %v914 = vsel %vm530, 1, 0
        %v915 = vsel %vm531, 1, 0
        %v916 = vsel %vm532, 1, 0
        %v917 = vsel %vm533, 1, 0
        %v918 = vsel %vm534, 1, 0
        %v919 = vsel %vm535, 1, 0
        %v920 = vsel %vm536, 1, 0
        %v921 = vsel %vm537, 1, 0
        %v922 = vsel %vm538, 1, 0
        %v923 = vsel %vm539, 1, 0
        %v924 = vsel %vm540, 1, 0
        %v925 = vsel %vm541, 1, 0
        %v926 = vsel %vm542, 1, 0
        %v927 = vsel %vm543, 1, 0
        %v928 = vsel %vm544, 1, 0
        %v929 = vsel %vm545, 1, 0
        %v930 = vsel %vm546, 1, 0
        %v931 = vsel %vm547, 1, 0
        %v932 = vsel %vm548, 1, 0
        %v933 = vsel %vm549, 1, 0
        %v934 = vsel %vm550, 1, 0
        %v935 = vsel %vm551, 1, 0
        %v936 = vsel %vm552, 1, 0
        %v937 = vsel %vm553, 1, 0
        %v938 = vsel %vm554, 1, 0
        %v939 = vsel %vm555, 1, 0
        %v940 = vsel %vm556, 1, 0
        %v941 = vsel %vm557, 1, 0
        %v942 = vsel %vm558, 1, 0
        %v943 = vsel %vm559, 1, 0
        %v944 = vsel %vm560, 1, 0
        %v945 = vsel %vm561, 1, 0
        %v946 = vsel %vm562, 1, 0
        %v947 = vsel %vm563, 1, 0
        %v948 = vsel %vm564, 1, 0
        %v949 = vsel %vm565, 1, 0
        %v950 = vsel %vm566, 1, 0
        %v951 = vsel %vm567, 1, 0
        %v952 = vsel %vm568, 1, 0
        %v953 = vsel %vm569, 1, 0
        %v954 = vsel %vm570, 1, 0
        %v955 = vsel %vm571, 1, 0
        %v956 = vsel %vm572, 1, 0
        %v957 = vsel %vm573, 1, 0
        %v958 = vsel %vm574, 1, 0
        %v959 = vsel %vm575, 1, 0
        %v960 = vsel %vm576, 1, 0
        %v961 = vsel %vm577, 1, 0
        %v962 = vsel %vm578, 1, 0
        %v963 = vsel %vm579, 1, 0
        %v964 = vsel %vm580, 1, 0
        %v965 = vsel %vm581, 1, 0
        %v966 = vsel %vm582, 1, 0
        %v967 = vsel %vm583, 1, 0
        %v968 = vsel %vm584, 1, 0
        %v969 = vsel %vm585, 1, 0
        %v970 = vsel %vm586, 1, 0
        %v971 = vsel %vm587, 1, 0
        %v972 = vsel %vm588, 1, 0
        %v973 = vsel %vm589, 1, 0
        %v974 = vsel %vm590, 1, 0
        %v975 = vsel %vm591, 1, 0
        %v976 = vsel %vm592, 1, 0
        %v977 = vsel %vm593, 1, 0
        %v978 = vsel %vm594, 1, 0
        %v979 = vsel %vm595, 1, 0
        %v980 = vsel %vm596, 1, 0
        %v981 = vsel %vm597, 1, 0
        %v982 = vsel %vm598, 1, 0
        %v983 = vsel %vm599, 1, 0
        %v984 = vsel %vm600, 1, 0
        %v985 = vsel %vm601, 1, 0
        %v986 = vsel %vm602, 1, 0
        %v987 = vsel %vm603, 1, 0
        %v988 = vsel %vm604, 1, 0
        %v989 = vsel %vm605, 1, 0
        %v990 = vsel %vm606, 1, 0
        %v991 = vsel %vm607, 1, 0
        %v992 = vsel %vm608, 1, 0
        %v993 = vsel %vm609, 1, 0
        %v994 = vsel %vm610, 1, 0
        %v995 = vsel %vm611, 1, 0
        %v996 = vsel %vm612, 1, 0
        %v997 = vsel %vm613, 1, 0
        %v998 = vsel %vm614, 1, 0
        %v999 = vsel %vm615, 1, 0
        %v1000 = vsel %vm616, 1, 0
        %v1001 = vsel %vm617, 1, 0
        %v1002 = vsel %vm618, 1, 0
        %v1003 = vsel %vm619, 1, 0
        %v1004 = vsel %vm620, 1, 0
        %v1005 = vsel %vm621, 1, 0
        %v1006 = vsel %vm622, 1, 0
        %v1007 = vsel %vm623, 1, 0
        %v1008 = vsel %vm624, 1, 0
        %v1009 = vsel %vm625, 1, 0
        %v1010 = vsel %vm626, 1, 0
        %v1011 = vsel %vm627, 1, 0
        %v1012 = vsel %vm628, 1, 0
        %v1013 = vsel %vm629, 1, 0
        %v1014 = vsel %vm630, 1, 0
        %v1015 = vsel %vm631, 1, 0
        %v1016 = vsel %vm632, 1, 0
        %v1017 = vsel %vm633, 1, 0
        %v1018 = vsel %vm634, 1, 0
        %v1019 = vsel %vm635, 1, 0
        %v1020 = vsel %vm636, 1, 0
        %v1021 = vsel %vm637, 1, 0
        %v1022 = vsel %vm638, 1, 0
        %v1023 = vsel %vm639, 1, 0
        %v1024 = vsel %vm640, 1, 0
        %v1025 = vsel %vm641, 1, 0
        %v1026 = vsel %vm642, 1, 0
        %v1027 = vsel %vm643, 1, 0
        %v1028 = vsel %vm644, 1, 0
        %v1029 = vsel %vm645, 1, 0
        %v1030 = vsel %vm646, 1, 0
        %v1031 = vsel %vm647, 1, 0
        %v1032 = vsel %vm648, 1, 0
        %v1033 = vsel %vm649, 1, 0
        %v1034 = vsel %vm650, 1, 0
        %v1035 = vsel %vm651, 1, 0
        %v1036 = vsel %vm652, 1, 0
        %v1037 = vsel %vm653, 1, 0
        %v1038 = vsel %vm654, 1, 0
        %v1039 = vsel %vm655, 1, 0
        %v1040 = vsel %vm656, 1, 0
        %v1041 = vsel %vm657, 1, 0
        %v1042 = vsel %vm658, 1, 0
        %v1043 = vsel %vm659, 1, 0
        %v1044 = vsel %vm660, 1, 0
        %v1045 = vsel %vm661, 1, 0
        %v1046 = vsel %vm662, 1, 0
        %v1047 = vsel %vm663, 1, 0
        %v1048 = vsel %vm664, 1, 0
        %v1049 = vsel %vm665, 1, 0
        %v1050 = vsel %vm666, 1, 0
        %v1051 = vsel %vm667, 1, 0
        %v1052 = vsel %vm668, 1, 0
        %v1053 = vsel %vm669, 1, 0
        %v1054 = vsel %vm670, 1, 0
        %v1055 = vsel %vm671, 1, 0
        %v1056 = vsel %vm672, 1, 0
        %v1057 = vsel %vm673, 1, 0
        %v1058 = vsel %vm674, 1, 0
        %v1059 = vsel %vm675, 1, 0
        %v1060 = vsel %vm676, 1, 0
        %v1061 = vsel %vm677, 1, 0
        %v1062 = vsel %vm678, 1, 0
        %v1063 = vsel %vm679, 1, 0
        %v1064 = vsel %vm680, 1, 0
        %v1065 = vsel %vm681, 1, 0
        %v1066 = vsel %vm682, 1, 0
        %v1067 = vsel %vm683, 1, 0
        %v1068 = vsel %vm684, 1, 0
        %v1069 = vsel %vm685, 1, 0
        %v1070 = vsel %vm686, 1, 0
        %v1071 = vsel %vm687, 1, 0
        %v1072 = vsel %vm688, 1, 0
        %v1073 = vsel %vm689, 1, 0
        %v1074 = vsel %vm690, 1, 0
        %v1075 = vsel %vm691, 1, 0
        %v1076 = vsel %vm692, 1, 0
        %v1077 = vsel %vm693, 1, 0
        %v1078 = vsel %vm694, 1, 0
        %v1079 = vsel %vm695, 1, 0
        %v1080 = vsel %vm696, 1, 0
        %v1081 = vsel %vm697, 1, 0
        %v1082 = vsel %vm698, 1, 0
        %v1083 = vsel %vm699, 1, 0
        %v1084 = vsel %vm700, 1, 0
        %v1085 = vsel %vm701, 1, 0
        %v1086 = vsel %vm702, 1, 0
        %v1087 = vsel %vm703, 1, 0
        %v1088 = vsel %vm704, 1, 0
        %v1089 = vsel %vm705, 1, 0
        %v1090 = vsel %vm706, 1, 0
        %v1091 = vsel %vm707, 1, 0
        %v1092 = vsel %vm708, 1, 0
        %v1093 = vsel %vm709, 1, 0
        %v1094 = vsel %vm710, 1, 0
        %v1095 = vsel %vm711, 1, 0
        %v1096 = vsel %vm712, 1, 0
        %v1097 = vsel %vm713, 1, 0
        %v1098 = vcvt.s32.f32 %v714
        %v1099 = vcvt.s32.f32 %v715
        %v1100 = vcvt.s32.f32 %v716
        %v1101 = vcvt.s32.f32 %v717
        %v1102 = vcvt.s32.f32 %v718
        %v1103 = vcvt.s32.f32 %v719
        %v1104 = vcvt.s32.f32 %v720
        %v1105 = vcvt.s32.f32 %v721
        %v1106 = vcvt.s32.f32 %v722
        %v1107 = vcvt.s32.f32 %v723
        %v1108 = vcvt.s32.f32 %v724
        %v1109 = vcvt.s32.f32 %v725
        %v1110 = vcvt.s32.f32 %v726
        %v1111 = vcvt.s32.f32 %v727
        %v1112 = vcvt.s32.f32 %v728
        %v1113 = vcvt.s32.f32 %v729
        %v1114 = vcvt.s32.f32 %v730
        %v1115 = vcvt.s32.f32 %v731
        %v1116 = vcvt.s32.f32 %v732
        %v1117 = vcvt.s32.f32 %v733
        %v1118 = vcvt.s32.f32 %v734
        %v1119 = vcvt.s32.f32 %v735
        %v1120 = vcvt.s32.f32 %v736
        %v1121 = vcvt.s32.f32 %v737
        %v1122 = vcvt.s32.f32 %v738
        %v1123 = vcvt.s32.f32 %v739
        %v1124 = vcvt.s32.f32 %v740
        %v1125 = vcvt.s32.f32 %v741
        %v1126 = vcvt.s32.f32 %v742
        %v1127 = vcvt.s32.f32 %v743
        %v1128 = vcvt.s32.f32 %v744
        %v1129 = vcvt.s32.f32 %v745
        %v1130 = vcvt.s32.f32 %v746
        %v1131 = vcvt.s32.f32 %v747
        %v1132 = vcvt.s32.f32 %v748
        %v1133 = vcvt.s32.f32 %v749
        %v1134 = vcvt.s32.f32 %v750
        %v1135 = vcvt.s32.f32 %v751
        %v1136 = vcvt.s32.f32 %v752
        %v1137 = vcvt.s32.f32 %v753
        %v1138 = vcvt.s32.f32 %v754
        %v1139 = vcvt.s32.f32 %v755
        %v1140 = vcvt.s32.f32 %v756
        %v1141 = vcvt.s32.f32 %v757
        %v1142 = vcvt.s32.f32 %v758
        %v1143 = vcvt.s32.f32 %v759
        %v1144 = vcvt.s32.f32 %v760
        %v1145 = vcvt.s32.f32 %v761
        %v1146 = vcvt.s32.f32 %v762
        %v1147 = vcvt.s32.f32 %v763
        %v1148 = vcvt.s32.f32 %v764
        %v1149 = vcvt.s32.f32 %v765
        %v1150 = vcvt.s32.f32 %v766
        %v1151 = vcvt.s32.f32 %v767
        %v1152 = vcvt.s32.f32 %v768
        %v1153 = vcvt.s32.f32 %v769
        %v1154 = vcvt.s32.f32 %v770
        %v1155 = vcvt.s32.f32 %v771
        %v1156 = vcvt.s32.f32 %v772
        %v1157 = vcvt.s32.f32 %v773
        %v1158 = vcvt.s32.f32 %v774
        %v1159 = vcvt.s32.f32 %v775
        %v1160 = vcvt.s32.f32 %v776
        %v1161 = vcvt.s32.f32 %v777
        %v1162 = vcvt.s32.f32 %v778
        %v1163 = vcvt.s32.f32 %v779
        %v1164 = vcvt.s32.f32 %v780
        %v1165 = vcvt.s32.f32 %v781
        %v1166 = vcvt.s32.f32 %v782
        %v1167 = vcvt.s32.f32 %v783
        %v1168 = vcvt.s32.f32 %v784
        %v1169 = vcvt.s32.f32 %v785
        %v1170 = vcvt.s32.f32 %v786
        %v1171 = vcvt.s32.f32 %v787
        %v1172 = vcvt.s32.f32 %v788
        %v1173 = vcvt.s32.f32 %v789
        %v1174 = vcvt.s32.f32 %v790
        %v1175 = vcvt.s32.f32 %v791
        %v1176 = vcvt.s32.f32 %v792
        %v1177 = vcvt.s32.f32 %v793
        %v1178 = vcvt.s32.f32 %v794
        %v1179 = vcvt.s32.f32 %v795
        %v1180 = vcvt.s32.f32 %v796
        %v1181 = vcvt.s32.f32 %v797
        %v1182 = vcvt.s32.f32 %v798
        %v1183 = vcvt.s32.f32 %v799
        %v1184 = vcvt.s32.f32 %v800
        %v1185 = vcvt.s32.f32 %v801
        %v1186 = vcvt.s32.f32 %v802
        %v1187 = vcvt.s32.f32 %v803
        %v1188 = vcvt.s32.f32 %v804
        %v1189 = vcvt.s32.f32 %v805
        %v1190 = vcvt.s32.f32 %v806
        %v1191 = vcvt.s32.f32 %v807
        %v1192 = vcvt.s32.f32 %v808
        %v1193 = vcvt.s32.f32 %v809
        %v1194 = vcvt.s32.f32 %v810
        %v1195 = vcvt.s32.f32 %v811
        %v1196 = vcvt.s32.f32 %v812
        %v1197 = vcvt.s32.f32 %v813
        %v1198 = vcvt.s32.f32 %v814
        %v1199 = vcvt.s32.f32 %v815
        %v1200 = vcvt.s32.f32 %v816
        %v1201 = vcvt.s32.f32 %v817
        %v1202 = vcvt.s32.f32 %v818
        %v1203 = vcvt.s32.f32 %v819
        %v1204 = vcvt.s32.f32 %v820
        %v1205 = vcvt.s32.f32 %v821
        %v1206 = vcvt.s32.f32 %v822
        %v1207 = vcvt.s32.f32 %v823
        %v1208 = vcvt.s32.f32 %v824
        %v1209 = vcvt.s32.f32 %v825
        %v1210 = vcvt.s32.f32 %v826
        %v1211 = vcvt.s32.f32 %v827
        %v1212 = vcvt.s32.f32 %v828
        %v1213 = vcvt.s32.f32 %v829
        %v1214 = vcvt.s32.f32 %v830
        %v1215 = vcvt.s32.f32 %v831
        %v1216 = vcvt.s32.f32 %v832
        %v1217 = vcvt.s32.f32 %v833
        %v1218 = vcvt.s32.f32 %v834
        %v1219 = vcvt.s32.f32 %v835
        %v1220 = vcvt.s32.f32 %v836
        %v1221 = vcvt.s32.f32 %v837
        %v1222 = vcvt.s32.f32 %v838
        %v1223 = vcvt.s32.f32 %v839
        %v1224 = vcvt.s32.f32 %v840
        %v1225 = vcvt.s32.f32 %v841
        %v1226 = vcvt.s32.f32 %v842
        %v1227 = vcvt.s32.f32 %v843
        %v1228 = vcvt.s32.f32 %v844
        %v1229 = vcvt.s32.f32 %v845
        %v1230 = vcvt.s32.f32 %v846
        %v1231 = vcvt.s32.f32 %v847
        %v1232 = vcvt.s32.f32 %v848
        %v1233 = vcvt.s32.f32 %v849
        %v1234 = vcvt.s32.f32 %v850
        %v1235 = vcvt.s32.f32 %v851
        %v1236 = vcvt.s32.f32 %v852
        %v1237 = vcvt.s32.f32 %v853
        %v1238 = vcvt.s32.f32 %v854
        %v1239 = vcvt.s32.f32 %v855
        %v1240 = vcvt.s32.f32 %v856
        %v1241 = vcvt.s32.f32 %v857
        %v1242 = vcvt.s32.f32 %v858
        %v1243 = vcvt.s32.f32 %v859
        %v1244 = vcvt.s32.f32 %v860
        %v1245 = vcvt.s32.f32 %v861
        %v1246 = vcvt.s32.f32 %v862
        %v1247 = vcvt.s32.f32 %v863
        %v1248 = vcvt.s32.f32 %v864
        %v1249 = vcvt.s32.f32 %v865
        %v1250 = vcvt.s32.f32 %v866
        %v1251 = vcvt.s32.f32 %v867
        %v1252 = vcvt.s32.f32 %v868
        %v1253 = vcvt.s32.f32 %v869
        %v1254 = vcvt.s32.f32 %v870
        %v1255 = vcvt.s32.f32 %v871
        %v1256 = vcvt.s32.f32 %v872
        %v1257 = vcvt.s32.f32 %v873
        %v1258 = vcvt.s32.f32 %v874
        %v1259 = vcvt.s32.f32 %v875
        %v1260 = vcvt.s32.f32 %v876
        %v1261 = vcvt.s32.f32 %v877
        %v1262 = vcvt.s32.f32 %v878
        %v1263 = vcvt.s32.f32 %v879
        %v1264 = vcvt.s32.f32 %v880
        %v1265 = vcvt.s32.f32 %v881
        %v1266 = vcvt.s32.f32 %v882
        %v1267 = vcvt.s32.f32 %v883
        %v1268 = vcvt.s32.f32 %v884
        %v1269 = vcvt.s32.f32 %v885
        %v1270 = vcvt.s32.f32 %v886
        %v1271 = vcvt.s32.f32 %v887
        %v1272 = vcvt.s32.f32 %v888
        %v1273 = vcvt.s32.f32 %v889
        %v1274 = vcvt.s32.f32 %v890
        %v1275 = vcvt.s32.f32 %v891
        %v1276 = vcvt.s32.f32 %v892
        %v1277 = vcvt.s32.f32 %v893
        %v1278 = vcvt.s32.f32 %v894
        %v1279 = vcvt.s32.f32 %v895
        %v1280 = vcvt.s32.f32 %v896
        %v1281 = vcvt.s32.f32 %v897
        %v1282 = vcvt.s32.f32 %v898
        %v1283 = vcvt.s32.f32 %v899
        %v1284 = vcvt.s32.f32 %v900
        %v1285 = vcvt.s32.f32 %v901
        %v1286 = vcvt.s32.f32 %v902
        %v1287 = vcvt.s32.f32 %v903
        %v1288 = vcvt.s32.f32 %v904
        %v1289 = vcvt.s32.f32 %v905
        %v1290 = vcvt.s32.f32 %v906
        %v1291 = vcvt.s32.f32 %v907
        %v1292 = vcvt.s32.f32 %v908
        %v1293 = vcvt.s32.f32 %v909
        %v1294 = vcvt.s32.f32 %v910
        %v1295 = vcvt.s32.f32 %v911
        %v1296 = vcvt.s32.f32 %v912
        %v1297 = vcvt.s32.f32 %v913
        %v1298 = vcvt.s32.f32 %v914
        %v1299 = vcvt.s32.f32 %v915
        %v1300 = vcvt.s32.f32 %v916
        %v1301 = vcvt.s32.f32 %v917
        %v1302 = vcvt.s32.f32 %v918
        %v1303 = vcvt.s32.f32 %v919
        %v1304 = vcvt.s32.f32 %v920
        %v1305 = vcvt.s32.f32 %v921
        %v1306 = vcvt.s32.f32 %v922
        %v1307 = vcvt.s32.f32 %v923
        %v1308 = vcvt.s32.f32 %v924
        %v1309 = vcvt.s32.f32 %v925
        %v1310 = vcvt.s32.f32 %v926
        %v1311 = vcvt.s32.f32 %v927
        %v1312 = vcvt.s32.f32 %v928
        %v1313 = vcvt.s32.f32 %v929
        %v1314 = vcvt.s32.f32 %v930
        %v1315 = vcvt.s32.f32 %v931
        %v1316 = vcvt.s32.f32 %v932
        %v1317 = vcvt.s32.f32 %v933
        %v1318 = vcvt.s32.f32 %v934
        %v1319 = vcvt.s32.f32 %v935
        %v1320 = vcvt.s32.f32 %v936
        %v1321 = vcvt.s32.f32 %v937
        %v1322 = vcvt.s32.f32 %v938
        %v1323 = vcvt.s32.f32 %v939
        %v1324 = vcvt.s32.f32 %v940
        %v1325 = vcvt.s32.f32 %v941
        %v1326 = vcvt.s32.f32 %v942
        %v1327 = vcvt.s32.f32 %v943
        %v1328 = vcvt.s32.f32 %v944
        %v1329 = vcvt.s32.f32 %v945
        %v1330 = vcvt.s32.f32 %v946
        %v1331 = vcvt.s32.f32 %v947
        %v1332 = vcvt.s32.f32 %v948
        %v1333 = vcvt.s32.f32 %v949
        %v1334 = vcvt.s32.f32 %v950
        %v1335 = vcvt.s32.f32 %v951
        %v1336 = vcvt.s32.f32 %v952
        %v1337 = vcvt.s32.f32 %v953
        %v1338 = vcvt.s32.f32 %v954
        %v1339 = vcvt.s32.f32 %v955
        %v1340 = vcvt.s32.f32 %v956
        %v1341 = vcvt.s32.f32 %v957
        %v1342 = vcvt.s32.f32 %v958
        %v1343 = vcvt.s32.f32 %v959
        %v1344 = vcvt.s32.f32 %v960
        %v1345 = vcvt.s32.f32 %v961
        %v1346 = vcvt.s32.f32 %v962
        %v1347 = vcvt.s32.f32 %v963
        %v1348 = vcvt.s32.f32 %v964
        %v1349 = vcvt.s32.f32 %v965
        %v1350 = vcvt.s32.f32 %v966
        %v1351 = vcvt.s32.f32 %v967
        %v1352 = vcvt.s32.f32 %v968
        %v1353 = vcvt.s32.f32 %v969
        %v1354 = vcvt.s32.f32 %v970
        %v1355 = vcvt.s32.f32 %v971
        %v1356 = vcvt.s32.f32 %v972
        %v1357 = vcvt.s32.f32 %v973
        %v1358 = vcvt.s32.f32 %v974
        %v1359 = vcvt.s32.f32 %v975
        %v1360 = vcvt.s32.f32 %v976
        %v1361 = vcvt.s32.f32 %v977
        %v1362 = vcvt.s32.f32 %v978
        %v1363 = vcvt.s32.f32 %v979
        %v1364 = vcvt.s32.f32 %v980
        %v1365 = vcvt.s32.f32 %v981
        %v1366 = vcvt.s32.f32 %v982
        %v1367 = vcvt.s32.f32 %v983
        %v1368 = vcvt.s32.f32 %v984
        %v1369 = vcvt.s32.f32 %v985
        %v1370 = vcvt.s32.f32 %v986
        %v1371 = vcvt.s32.f32 %v987
        %v1372 = vcvt.s32.f32 %v988
        %v1373 = vcvt.s32.f32 %v989
        %v1374 = vcvt.s32.f32 %v990
        %v1375 = vcvt.s32.f32 %v991
        %v1376 = vcvt.s32.f32 %v992
        %v1377 = vcvt.s32.f32 %v993
        %v1378 = vcvt.s32.f32 %v994
        %v1379 = vcvt.s32.f32 %v995
        %v1380 = vcvt.s32.f32 %v996
        %v1381 = vcvt.s32.f32 %v997
        %v1382 = vcvt.s32.f32 %v998
        %v1383 = vcvt.s32.f32 %v999
        %v1384 = vcvt.s32.f32 %v1000
        %v1385 = vcvt.s32.f32 %v1001
        %v1386 = vcvt.s32.f32 %v1002
        %v1387 = vcvt.s32.f32 %v1003
        %v1388 = vcvt.s32.f32 %v1004
        %v1389 = vcvt.s32.f32 %v1005
        %v1390 = vcvt.s32.f32 %v1006
        %v1391 = vcvt.s32.f32 %v1007
        %v1392 = vcvt.s32.f32 %v1008
        %v1393 = vcvt.s32.f32 %v1009
        %v1394 = vcvt.s32.f32 %v1010
        %v1395 = vcvt.s32.f32 %v1011
        %v1396 = vcvt.s32.f32 %v1012
        %v1397 = vcvt.s32.f32 %v1013
        %v1398 = vcvt.s32.f32 %v1014
        %v1399 = vcvt.s32.f32 %v1015
        %v1400 = vcvt.s32.f32 %v1016
        %v1401 = vcvt.s32.f32 %v1017
        %v1402 = vcvt.s32.f32 %v1018
        %v1403 = vcvt.s32.f32 %v1019
        %v1404 = vcvt.s32.f32 %v1020
        %v1405 = vcvt.s32.f32 %v1021
        %v1406 = vcvt.s32.f32 %v1022
        %v1407 = vcvt.s32.f32 %v1023
        %v1408 = vcvt.s32.f32 %v1024
        %v1409 = vcvt.s32.f32 %v1025
        %v1410 = vcvt.s32.f32 %v1026
        %v1411 = vcvt.s32.f32 %v1027
        %v1412 = vcvt.s32.f32 %v1028
        %v1413 = vcvt.s32.f32 %v1029
        %v1414 = vcvt.s32.f32 %v1030
        %v1415 = vcvt.s32.f32 %v1031
        %v1416 = vcvt.s32.f32 %v1032
        %v1417 = vcvt.s32.f32 %v1033
        %v1418 = vcvt.s32.f32 %v1034
        %v1419 = vcvt.s32.f32 %v1035
        %v1420 = vcvt.s32.f32 %v1036
        %v1421 = vcvt.s32.f32 %v1037
        %v1422 = vcvt.s32.f32 %v1038
        %v1423 = vcvt.s32.f32 %v1039
        %v1424 = vcvt.s32.f32 %v1040
        %v1425 = vcvt.s32.f32 %v1041
        %v1426 = vcvt.s32.f32 %v1042
        %v1427 = vcvt.s32.f32 %v1043
        %v1428 = vcvt.s32.f32 %v1044
        %v1429 = vcvt.s32.f32 %v1045
        %v1430 = vcvt.s32.f32 %v1046
        %v1431 = vcvt.s32.f32 %v1047
        %v1432 = vcvt.s32.f32 %v1048
        %v1433 = vcvt.s32.f32 %v1049
        %v1434 = vcvt.s32.f32 %v1050
        %v1435 = vcvt.s32.f32 %v1051
        %v1436 = vcvt.s32.f32 %v1052
        %v1437 = vcvt.s32.f32 %v1053
        %v1438 = vcvt.s32.f32 %v1054
        %v1439 = vcvt.s32.f32 %v1055
        %v1440 = vcvt.s32.f32 %v1056
        %v1441 = vcvt.s32.f32 %v1057
        %v1442 = vcvt.s32.f32 %v1058
        %v1443 = vcvt.s32.f32 %v1059
        %v1444 = vcvt.s32.f32 %v1060
        %v1445 = vcvt.s32.f32 %v1061
        %v1446 = vcvt.s32.f32 %v1062
        %v1447 = vcvt.s32.f32 %v1063
        %v1448 = vcvt.s32.f32 %v1064
        %v1449 = vcvt.s32.f32 %v1065
        %v1450 = vcvt.s32.f32 %v1066
        %v1451 = vcvt.s32.f32 %v1067
        %v1452 = vcvt.s32.f32 %v1068
        %v1453 = vcvt.s32.f32 %v1069
        %v1454 = vcvt.s32.f32 %v1070
        %v1455 = vcvt.s32.f32 %v1071
        %v1456 = vcvt.s32.f32 %v1072
        %v1457 = vcvt.s32.f32 %v1073
        %v1458 = vcvt.s32.f32 %v1074
        %v1459 = vcvt.s32.f32 %v1075
        %v1460 = vcvt.s32.f32 %v1076
        %v1461 = vcvt.s32.f32 %v1077
        %v1462 = vcvt.s32.f32 %v1078
        %v1463 = vcvt.s32.f32 %v1079
        %v1464 = vcvt.s32.f32 %v1080
        %v1465 = vcvt.s32.f32 %v1081
        %v1466 = vcvt.s32.f32 %v1082
        %v1467 = vcvt.s32.f32 %v1083
        %v1468 = vcvt.s32.f32 %v1084
        %v1469 = vcvt.s32.f32 %v1085
        %v1470 = vcvt.s32.f32 %v1086
        %v1471 = vcvt.s32.f32 %v1087
        %v1472 = vcvt.s32.f32 %v1088
        %v1473 = vcvt.s32.f32 %v1089
        %v1474 = vcvt.s32.f32 %v1090
        %v1475 = vcvt.s32.f32 %v1091
        %v1476 = vcvt.s32.f32 %v1092
        %v1477 = vcvt.s32.f32 %v1093
        %v1478 = vcvt.s32.f32 %v1094
        %v1479 = vcvt.s32.f32 %v1095
        %v1480 = vcvt.s32.f32 %v1096
        %v1481 = vcvt.s32.f32 %v1097
        %v1482 = vld [vmem:[#allocation2] sm:$0xff]
        %v1483 = vld [vmem:[#allocation2 + $0x8] sm:$0xff]
        %v1484 = vld [vmem:[#allocation2 + $0x10] sm:$0xff]
        %v1485 = vld [vmem:[#allocation2 + $0x18] sm:$0xff]
        %v1486 = vld [vmem:[%s202] sm:$0xff]
        %v1487 = vld [vmem:[%s202 + $0x8] sm:$0xff]
        %v1488 = vld [vmem:[%s202 + $0x10] sm:$0xff]
        %v1489 = vld [vmem:[%s202 + $0x18] sm:$0xff]
        %v1490 = vld [vmem:[%s202 + $0x20] sm:$0xff]
        %v1491 = vld [vmem:[%s202 + $0x28] sm:$0xff]
        %v1492 = vld [vmem:[%s202 + $0x30] sm:$0xff]
        %v1493 = vld [vmem:[%s202 + $0x38] sm:$0xff]
        %v1494 = vld [vmem:[%s202 + $0x40] sm:$0xff]
        %v1495 = vld [vmem:[%s202 + $0x48] sm:$0xff]
        %v1496 = vld [vmem:[%s202 + $0x50] sm:$0xff]
        %v1497 = vld [vmem:[%s202 + $0x58] sm:$0xff]
        %v1498 = vld [vmem:[%s202 + $0x60] sm:$0xff]
        %v1499 = vld [vmem:[%s202 + $0x68] sm:$0xff]
        %v1500 = vld [vmem:[%s202 + $0x70] sm:$0xff]
        %v1501 = vld [vmem:[%s202 + $0x78] sm:$0xff]
        %v1502 = vld [vmem:[%s202 + $0x80] sm:$0xff]
        %v1503 = vld [vmem:[%s202 + $0x88] sm:$0xff]
        %v1504 = vld [vmem:[%s202 + $0x90] sm:$0xff]
        %v1505 = vld [vmem:[%s202 + $0x98] sm:$0xff]
        %v1506 = vld [vmem:[%s202 + $0xa0] sm:$0xff]
        %v1507 = vld [vmem:[%s202 + $0xa8] sm:$0xff]
        %v1508 = vld [vmem:[%s202 + $0xb0] sm:$0xff]
        %v1509 = vld [vmem:[%s202 + $0xb8] sm:$0xff]
        %1510 = vmatprep.subr.mxu0 %v1099
        %1511 = vmatpush1.xpose.msra.mxu0 %v1098
        %1512 = vmatprep.subr.mxu0 %v1111
        %1513 = vmatpush1.xpose.msra.mxu0 %v1110
        %1514 = vmatprep.subr.mxu0 %v1123
        %1515 = vmatpush1.xpose.msra.mxu0 %v1122
        %1516 = vmatprep.subr.mxu0 %v1135
        %1517 = vmatpush1.xpose.msra.mxu0 %v1134
        %1518 = vmatprep.subr.mxu0 %v1147
        %1519 = vmatpush1.xpose.msra.mxu0 %v1146
        %1520 = vmatprep.subr.mxu0 %v1159
        %1521 = vmatpush1.xpose.msra.mxu0 %v1158
        %1522 = vmatprep.subr.mxu0 %v1171
        %1523 = vmatpush1.xpose.msra.mxu0 %v1170
        %1524 = vmatprep.subr.mxu0 %v1183
        %1525 = vmatpush1.xpose.msra.mxu0 %v1182
        %1526 = vmatprep.subr.mxu0 %v1195
        %1527 = vmatpush1.xpose.msra.mxu0 %v1194
        %1528 = vmatprep.subr.mxu0 %v1207
        %1529 = vmatpush1.xpose.msra.mxu0 %v1206
        %1530 = vmatprep.subr.mxu0 %v1219
        %1531 = vmatpush1.xpose.msra.mxu0 %v1218
        %1532 = vmatprep.subr.mxu0 %v1231
        %1533 = vmatpush1.xpose.msra.mxu0 %v1230
        %1534 = vmatprep.subr.mxu0 %v1243
        %1535 = vmatpush1.xpose.msra.mxu0 %v1242
        %1536 = vmatprep.subr.mxu0 %v1255
        %1537 = vmatpush1.xpose.msra.mxu0 %v1254
        %1538 = vmatprep.subr.mxu0 %v1267
        %1539 = vmatpush1.xpose.msra.mxu0 %v1266
        %1540 = vmatprep.subr.mxu0 %v1279
        %1541 = vmatpush1.xpose.msra.mxu0 %v1278
        %1542 = vmatprep.subr.mxu0 %v1291
        %1543 = vmatpush1.xpose.msra.mxu0 %v1290
        %1544 = vmatprep.subr.mxu0 %v1303
        %1545 = vmatpush1.xpose.msra.mxu0 %v1302
        %1546 = vmatprep.subr.mxu0 %v1315
        %1547 = vmatpush1.xpose.msra.mxu0 %v1314
        %1548 = vmatprep.subr.mxu0 %v1327
        %1549 = vmatpush1.xpose.msra.mxu0 %v1326
        %1550 = vmatprep.subr.mxu0 %v1339
        %1551 = vmatpush1.xpose.msra.mxu0 %v1338
        %1552 = vmatprep.subr.mxu0 %v1351
        %1553 = vmatpush1.xpose.msra.mxu0 %v1350
        %1554 = vmatprep.subr.mxu0 %v1363
        %1555 = vmatpush1.xpose.msra.mxu0 %v1362
        %1556 = vmatprep.subr.mxu0 %v1375
        %1557 = vmatpush1.xpose.msra.mxu0 %v1374
        %1558 = vmatprep.subr.mxu0 %v1387
        %1559 = vmatpush1.xpose.msra.mxu0 %v1386
        %1560 = vmatprep.subr.mxu0 %v1399
        %1561 = vmatpush1.xpose.msra.mxu0 %v1398
        %1562 = vmatprep.subr.mxu0 %v1411
        %1563 = vmatpush1.xpose.msra.mxu0 %v1410
        %1564 = vmatprep.subr.mxu0 %v1423
        %1565 = vmatpush1.xpose.msra.mxu0 %v1422
        %1566 = vmatprep.subr.mxu0 %v1435
        %1567 = vmatpush1.xpose.msra.mxu0 %v1434
        %1568 = vmatprep.subr.mxu0 %v1447
        %1569 = vmatpush1.xpose.msra.mxu0 %v1446
        %1570 = vmatprep.subr.mxu0 %v1459
        %1571 = vmatpush1.xpose.msra.mxu0 %v1458
        %1572 = vmatprep.subr.mxu0 %v1471
        %1573 = vmatpush1.xpose.msra.mxu0 %v1470
        %1574 = vmatprep.mubr.f32.mxu0 %v1487
        %1575 = vmatmul.mubr.f32.gmra.mrb[0].mxu0 %v1486
        %v1576 = vpop.f32.mrb[0].mxu0
        %v1577 = vadd.f32 0.0, %v1576
        %v1578 = vpop.f32.mrb[0].mxu0
        %v1579 = vadd.f32 0.0, %v1578
        %1580 = vmatprep.mubr.f32.mxu0 %v1499
        %1581 = vmatmul.mubr.f32.gmra.mrb[0].mxu0 %v1498
        %v1582 = vpop.f32.mrb[0].mxu0
        %v1583 = vadd.f32 0.0, %v1582
        %v1584 = vpop.f32.mrb[0].mxu0
        %v1585 = vadd.f32 0.0, %v1584
        %1586 = vdwg.mxu0
        %1587 = vmatprep.subr.mxu0 %v1101
        %1588 = vmatpush1.xpose.msra.mxu0 %v1100
        %1589 = vmatprep.subr.mxu0 %v1113
        %1590 = vmatpush1.xpose.msra.mxu0 %v1112
        %1591 = vmatprep.subr.mxu0 %v1125
        %1592 = vmatpush1.xpose.msra.mxu0 %v1124
        %1593 = vmatprep.subr.mxu0 %v1137
        %1594 = vmatpush1.xpose.msra.mxu0 %v1136
        %1595 = vmatprep.subr.mxu0 %v1149
        %1596 = vmatpush1.xpose.msra.mxu0 %v1148
        %1597 = vmatprep.subr.mxu0 %v1161
        %1598 = vmatpush1.xpose.msra.mxu0 %v1160
        %1599 = vmatprep.subr.mxu0 %v1173
        %1600 = vmatpush1.xpose.msra.mxu0 %v1172
        %1601 = vmatprep.subr.mxu0 %v1185
        %1602 = vmatpush1.xpose.msra.mxu0 %v1184
        %1603 = vmatprep.subr.mxu0 %v1197
        %1604 = vmatpush1.xpose.msra.mxu0 %v1196
        %1605 = vmatprep.subr.mxu0 %v1209
        %1606 = vmatpush1.xpose.msra.mxu0 %v1208
        %1607 = vmatprep.subr.mxu0 %v1221
        %1608 = vmatpush1.xpose.msra.mxu0 %v1220
        %1609 = vmatprep.subr.mxu0 %v1233
        %1610 = vmatpush1.xpose.msra.mxu0 %v1232
        %1611 = vmatprep.subr.mxu0 %v1245
        %1612 = vmatpush1.xpose.msra.mxu0 %v1244
        %1613 = vmatprep.subr.mxu0 %v1257
        %1614 = vmatpush1.xpose.msra.mxu0 %v1256
        %1615 = vmatprep.subr.mxu0 %v1269
        %1616 = vmatpush1.xpose.msra.mxu0 %v1268
        %1617 = vmatprep.subr.mxu0 %v1281
        %1618 = vmatpush1.xpose.msra.mxu0 %v1280
        %1619 = vmatprep.subr.mxu0 %v1293
        %1620 = vmatpush1.xpose.msra.mxu0 %v1292
        %1621 = vmatprep.subr.mxu0 %v1305
        %1622 = vmatpush1.xpose.msra.mxu0 %v1304
        %1623 = vmatprep.subr.mxu0 %v1317
        %1624 = vmatpush1.xpose.msra.mxu0 %v1316
        %1625 = vmatprep.subr.mxu0 %v1329
        %1626 = vmatpush1.xpose.msra.mxu0 %v1328
        %1627 = vmatprep.subr.mxu0 %v1341
        %1628 = vmatpush1.xpose.msra.mxu0 %v1340
        %1629 = vmatprep.subr.mxu0 %v1353
        %1630 = vmatpush1.xpose.msra.mxu0 %v1352
        %1631 = vmatprep.subr.mxu0 %v1365
        %1632 = vmatpush1.xpose.msra.mxu0 %v1364
        %1633 = vmatprep.subr.mxu0 %v1377
        %1634 = vmatpush1.xpose.msra.mxu0 %v1376
        %1635 = vmatprep.subr.mxu0 %v1389
        %1636 = vmatpush1.xpose.msra.mxu0 %v1388
        %1637 = vmatprep.subr.mxu0 %v1401
        %1638 = vmatpush1.xpose.msra.mxu0 %v1400
        %1639 = vmatprep.subr.mxu0 %v1413
        %1640 = vmatpush1.xpose.msra.mxu0 %v1412
        %1641 = vmatprep.subr.mxu0 %v1425
        %1642 = vmatpush1.xpose.msra.mxu0 %v1424
        %1643 = vmatprep.subr.mxu0 %v1437
        %1644 = vmatpush1.xpose.msra.mxu0 %v1436
        %1645 = vmatprep.subr.mxu0 %v1449
        %1646 = vmatpush1.xpose.msra.mxu0 %v1448
        %1647 = vmatprep.subr.mxu0 %v1461
        %1648 = vmatpush1.xpose.msra.mxu0 %v1460
        %1649 = vmatprep.subr.mxu0 %v1473
        %1650 = vmatpush1.xpose.msra.mxu0 %v1472
        %1651 = vmatprep.mubr.f32.mxu0 %v1489
        %1652 = vmatmul.mubr.f32.gmra.mrb[0].mxu0 %v1488
        %v1653 = vpop.f32.mrb[0].mxu0
        %v1654 = vadd.f32 %v1577, %v1653
        %v1655 = vpop.f32.mrb[0].mxu0
        %v1656 = vadd.f32 %v1579, %v1655
        %1657 = vmatprep.mubr.f32.mxu0 %v1501
        %1658 = vmatmul.mubr.f32.gmra.mrb[0].mxu0 %v1500
        %v1659 = vpop.f32.mrb[0].mxu0
        %v1660 = vadd.f32 %v1583, %v1659
        %v1661 = vpop.f32.mrb[0].mxu0
        %v1662 = vadd.f32 %v1585, %v1661
        %1663 = vdwg.mxu0
        %1664 = vmatprep.subr.mxu0 %v1103
        %1665 = vmatpush1.xpose.msra.mxu0 %v1102
        %1666 = vmatprep.subr.mxu0 %v1115
        %1667 = vmatpush1.xpose.msra.mxu0 %v1114
        %1668 = vmatprep.subr.mxu0 %v1127
        %1669 = vmatpush1.xpose.msra.mxu0 %v1126
        %1670 = vmatprep.subr.mxu0 %v1139
        %1671 = vmatpush1.xpose.msra.mxu0 %v1138
        %1672 = vmatprep.subr.mxu0 %v1151
        %1673 = vmatpush1.xpose.msra.mxu0 %v1150
        %1674 = vmatprep.subr.mxu0 %v1163
        %1675 = vmatpush1.xpose.msra.mxu0 %v1162
        %1676 = vmatprep.subr.mxu0 %v1175
        %1677 = vmatpush1.xpose.msra.mxu0 %v1174
        %1678 = vmatprep.subr.mxu0 %v1187
        %1679 = vmatpush1.xpose.msra.mxu0 %v1186
        %1680 = vmatprep.subr.mxu0 %v1199
        %1681 = vmatpush1.xpose.msra.mxu0 %v1198
        %1682 = vmatprep.subr.mxu0 %v1211
        %1683 = vmatpush1.xpose.msra.mxu0 %v1210
        %1684 = vmatprep.subr.mxu0 %v1223
        %1685 = vmatpush1.xpose.msra.mxu0 %v1222
        %1686 = vmatprep.subr.mxu0 %v1235
        %1687 = vmatpush1.xpose.msra.mxu0 %v1234
        %1688 = vmatprep.subr.mxu0 %v1247
        %1689 = vmatpush1.xpose.msra.mxu0 %v1246
        %1690 = vmatprep.subr.mxu0 %v1259
        %1691 = vmatpush1.xpose.msra.mxu0 %v1258
        %1692 = vmatprep.subr.mxu0 %v1271
        %1693 = vmatpush1.xpose.msra.mxu0 %v1270
        %1694 = vmatprep.subr.mxu0 %v1283
        %1695 = vmatpush1.xpose.msra.mxu0 %v1282
        %1696 = vmatprep.subr.mxu0 %v1295
        %1697 = vmatpush1.xpose.msra.mxu0 %v1294
        %1698 = vmatprep.subr.mxu0 %v1307
        %1699 = vmatpush1.xpose.msra.mxu0 %v1306
        %1700 = vmatprep.subr.mxu0 %v1319
        %1701 = vmatpush1.xpose.msra.mxu0 %v1318
        %1702 = vmatprep.subr.mxu0 %v1331
        %1703 = vmatpush1.xpose.msra.mxu0 %v1330
        %1704 = vmatprep.subr.mxu0 %v1343
        %1705 = vmatpush1.xpose.msra.mxu0 %v1342
        %1706 = vmatprep.subr.mxu0 %v1355
        %1707 = vmatpush1.xpose.msra.mxu0 %v1354
        %1708 = vmatprep.subr.mxu0 %v1367
        %1709 = vmatpush1.xpose.msra.mxu0 %v1366
        %1710 = vmatprep.subr.mxu0 %v1379
        %1711 = vmatpush1.xpose.msra.mxu0 %v1378
        %1712 = vmatprep.subr.mxu0 %v1391
        %1713 = vmatpush1.xpose.msra.mxu0 %v1390
        %1714 = vmatprep.subr.mxu0 %v1403
        %1715 = vmatpush1.xpose.msra.mxu0 %v1402
        %1716 = vmatprep.subr.mxu0 %v1415
        %1717 = vmatpush1.xpose.msra.mxu0 %v1414
        %1718 = vmatprep.subr.mxu0 %v1427
        %1719 = vmatpush1.xpose.msra.mxu0 %v1426
        %1720 = vmatprep.subr.mxu0 %v1439
        %1721 = vmatpush1.xpose.msra.mxu0 %v1438
        %1722 = vmatprep.subr.mxu0 %v1451
        %1723 = vmatpush1.xpose.msra.mxu0 %v1450
        %1724 = vmatprep.subr.mxu0 %v1463
        %1725 = vmatpush1.xpose.msra.mxu0 %v1462
        %1726 = vmatprep.subr.mxu0 %v1475
        %1727 = vmatpush1.xpose.msra.mxu0 %v1474
        %1728 = vmatprep.mubr.f32.mxu0 %v1491
        %1729 = vmatmul.mubr.f32.gmra.mrb[0].mxu0 %v1490
        %v1730 = vpop.f32.mrb[0].mxu0
        %v1731 = vadd.f32 %v1654, %v1730
        %v1732 = vpop.f32.mrb[0].mxu0
        %v1733 = vadd.f32 %v1656, %v1732
        %1734 = vmatprep.mubr.f32.mxu0 %v1503
        %1735 = vmatmul.mubr.f32.gmra.mrb[0].mxu0 %v1502
        %v1736 = vpop.f32.mrb[0].mxu0
        %v1737 = vadd.f32 %v1660, %v1736
        %v1738 = vpop.f32.mrb[0].mxu0
        %v1739 = vadd.f32 %v1662, %v1738
        %1740 = vdwg.mxu0
        %1741 = vmatprep.subr.mxu0 %v1105
        %1742 = vmatpush1.xpose.msra.mxu0 %v1104
        %1743 = vmatprep.subr.mxu0 %v1117
        %1744 = vmatpush1.xpose.msra.mxu0 %v1116
        %1745 = vmatprep.subr.mxu0 %v1129
        %1746 = vmatpush1.xpose.msra.mxu0 %v1128
        %1747 = vmatprep.subr.mxu0 %v1141
        %1748 = vmatpush1.xpose.msra.mxu0 %v1140
        %1749 = vmatprep.subr.mxu0 %v1153
        %1750 = vmatpush1.xpose.msra.mxu0 %v1152
        %1751 = vmatprep.subr.mxu0 %v1165
        %1752 = vmatpush1.xpose.msra.mxu0 %v1164
        %1753 = vmatprep.subr.mxu0 %v1177
        %1754 = vmatpush1.xpose.msra.mxu0 %v1176
        %1755 = vmatprep.subr.mxu0 %v1189
        %1756 = vmatpush1.xpose.msra.mxu0 %v1188
        %1757 = vmatprep.subr.mxu0 %v1201
        %1758 = vmatpush1.xpose.msra.mxu0 %v1200
        %1759 = vmatprep.subr.mxu0 %v1213
        %1760 = vmatpush1.xpose.msra.mxu0 %v1212
        %1761 = vmatprep.subr.mxu0 %v1225
        %1762 = vmatpush1.xpose.msra.mxu0 %v1224
        %1763 = vmatprep.subr.mxu0 %v1237
        %1764 = vmatpush1.xpose.msra.mxu0 %v1236
        %1765 = vmatprep.subr.mxu0 %v1249
        %1766 = vmatpush1.xpose.msra.mxu0 %v1248
        %1767 = vmatprep.subr.mxu0 %v1261
        %1768 = vmatpush1.xpose.msra.mxu0 %v1260
        %1769 = vmatprep.subr.mxu0 %v1273
        %1770 = vmatpush1.xpose.msra.mxu0 %v1272
        %1771 = vmatprep.subr.mxu0 %v1285
        %1772 = vmatpush1.xpose.msra.mxu0 %v1284
        %1773 = vmatprep.subr.mxu0 %v1297
        %1774 = vmatpush1.xpose.msra.mxu0 %v1296
        %1775 = vmatprep.subr.mxu0 %v1309
        %1776 = vmatpush1.xpose.msra.mxu0 %v1308
        %1777 = vmatprep.subr.mxu0 %v1321
        %1778 = vmatpush1.xpose.msra.mxu0 %v1320
        %1779 = vmatprep.subr.mxu0 %v1333
        %1780 = vmatpush1.xpose.msra.mxu0 %v1332
        %1781 = vmatprep.subr.mxu0 %v1345
        %1782 = vmatpush1.xpose.msra.mxu0 %v1344
        %1783 = vmatprep.subr.mxu0 %v1357
        %1784 = vmatpush1.xpose.msra.mxu0 %v1356
        %1785 = vmatprep.subr.mxu0 %v1369
        %1786 = vmatpush1.xpose.msra.mxu0 %v1368
        %1787 = vmatprep.subr.mxu0 %v1381
        %1788 = vmatpush1.xpose.msra.mxu0 %v1380
        %1789 = vmatprep.subr.mxu0 %v1393
        %1790 = vmatpush1.xpose.msra.mxu0 %v1392
        %1791 = vmatprep.subr.mxu0 %v1405
        %1792 = vmatpush1.xpose.msra.mxu0 %v1404
        %1793 = vmatprep.subr.mxu0 %v1417
        %1794 = vmatpush1.xpose.msra.mxu0 %v1416
        %1795 = vmatprep.subr.mxu0 %v1429
        %1796 = vmatpush1.xpose.msra.mxu0 %v1428
        %1797 = vmatprep.subr.mxu0 %v1441
        %1798 = vmatpush1.xpose.msra.mxu0 %v1440
        %1799 = vmatprep.subr.mxu0 %v1453
        %1800 = vmatpush1.xpose.msra.mxu0 %v1452
        %1801 = vmatprep.subr.mxu0 %v1465
        %1802 = vmatpush1.xpose.msra.mxu0 %v1464
        %1803 = vmatprep.subr.mxu0 %v1477
        %1804 = vmatpush1.xpose.msra.mxu0 %v1476
        %1805 = vmatprep.mubr.f32.mxu0 %v1493
        %1806 = vmatmul.mubr.f32.gmra.mrb[0].mxu0 %v1492
        %v1807 = vpop.f32.mrb[0].mxu0
        %v1808 = vadd.f32 %v1731, %v1807
        %v1809 = vpop.f32.mrb[0].mxu0
        %v1810 = vadd.f32 %v1733, %v1809
        %1811 = vmatprep.mubr.f32.mxu0 %v1505
        %1812 = vmatmul.mubr.f32.gmra.mrb[0].mxu0 %v1504
        %v1813 = vpop.f32.mrb[0].mxu0
        %v1814 = vadd.f32 %v1737, %v1813
        %v1815 = vpop.f32.mrb[0].mxu0
        %v1816 = vadd.f32 %v1739, %v1815
        %1817 = vdwg.mxu0
        %1818 = vmatprep.subr.mxu0 %v1107
        %1819 = vmatpush1.xpose.msra.mxu0 %v1106
        %1820 = vmatprep.subr.mxu0 %v1119
        %1821 = vmatpush1.xpose.msra.mxu0 %v1118
        %1822 = vmatprep.subr.mxu0 %v1131
        %1823 = vmatpush1.xpose.msra.mxu0 %v1130
        %1824 = vmatprep.subr.mxu0 %v1143
        %1825 = vmatpush1.xpose.msra.mxu0 %v1142
        %1826 = vmatprep.subr.mxu0 %v1155
        %1827 = vmatpush1.xpose.msra.mxu0 %v1154
        %1828 = vmatprep.subr.mxu0 %v1167
        %1829 = vmatpush1.xpose.msra.mxu0 %v1166
        %1830 = vmatprep.subr.mxu0 %v1179
        %1831 = vmatpush1.xpose.msra.mxu0 %v1178
        %1832 = vmatprep.subr.mxu0 %v1191
        %1833 = vmatpush1.xpose.msra.mxu0 %v1190
        %1834 = vmatprep.subr.mxu0 %v1203
        %1835 = vmatpush1.xpose.msra.mxu0 %v1202
        %1836 = vmatprep.subr.mxu0 %v1215
        %1837 = vmatpush1.xpose.msra.mxu0 %v1214
        %1838 = vmatprep.subr.mxu0 %v1227
        %1839 = vmatpush1.xpose.msra.mxu0 %v1226
        %1840 = vmatprep.subr.mxu0 %v1239
        %1841 = vmatpush1.xpose.msra.mxu0 %v1238
        %1842 = vmatprep.subr.mxu0 %v1251
        %1843 = vmatpush1.xpose.msra.mxu0 %v1250
        %1844 = vmatprep.subr.mxu0 %v1263
        %1845 = vmatpush1.xpose.msra.mxu0 %v1262
        %1846 = vmatprep.subr.mxu0 %v1275
        %1847 = vmatpush1.xpose.msra.mxu0 %v1274
        %1848 = vmatprep.subr.mxu0 %v1287
        %1849 = vmatpush1.xpose.msra.mxu0 %v1286
        %1850 = vmatprep.subr.mxu0 %v1299
        %1851 = vmatpush1.xpose.msra.mxu0 %v1298
        %1852 = vmatprep.subr.mxu0 %v1311
        %1853 = vmatpush1.xpose.msra.mxu0 %v1310
        %1854 = vmatprep.subr.mxu0 %v1323
        %1855 = vmatpush1.xpose.msra.mxu0 %v1322
        %1856 = vmatprep.subr.mxu0 %v1335
        %1857 = vmatpush1.xpose.msra.mxu0 %v1334
        %1858 = vmatprep.subr.mxu0 %v1347
        %1859 = vmatpush1.xpose.msra.mxu0 %v1346
        %1860 = vmatprep.subr.mxu0 %v1359
        %1861 = vmatpush1.xpose.msra.mxu0 %v1358
        %1862 = vmatprep.subr.mxu0 %v1371
        %1863 = vmatpush1.xpose.msra.mxu0 %v1370
        %1864 = vmatprep.subr.mxu0 %v1383
        %1865 = vmatpush1.xpose.msra.mxu0 %v1382
        %1866 = vmatprep.subr.mxu0 %v1395
        %1867 = vmatpush1.xpose.msra.mxu0 %v1394
        %1868 = vmatprep.subr.mxu0 %v1407
        %1869 = vmatpush1.xpose.msra.mxu0 %v1406
        %1870 = vmatprep.subr.mxu0 %v1419
        %1871 = vmatpush1.xpose.msra.mxu0 %v1418
        %1872 = vmatprep.subr.mxu0 %v1431
        %1873 = vmatpush1.xpose.msra.mxu0 %v1430
        %1874 = vmatprep.subr.mxu0 %v1443
        %1875 = vmatpush1.xpose.msra.mxu0 %v1442
        %1876 = vmatprep.subr.mxu0 %v1455
        %1877 = vmatpush1.xpose.msra.mxu0 %v1454
        %1878 = vmatprep.subr.mxu0 %v1467
        %1879 = vmatpush1.xpose.msra.mxu0 %v1466
        %1880 = vmatprep.subr.mxu0 %v1479
        %1881 = vmatpush1.xpose.msra.mxu0 %v1478
        %1882 = vmatprep.mubr.f32.mxu0 %v1495
        %1883 = vmatmul.mubr.f32.gmra.mrb[0].mxu0 %v1494
        %v1884 = vpop.f32.mrb[0].mxu0
        %v1885 = vadd.f32 %v1808, %v1884
        %v1886 = vpop.f32.mrb[0].mxu0
        %v1887 = vadd.f32 %v1810, %v1886
        %1888 = vmatprep.mubr.f32.mxu0 %v1507
        %1889 = vmatmul.mubr.f32.gmra.mrb[0].mxu0 %v1506
        %v1890 = vpop.f32.mrb[0].mxu0
        %v1891 = vadd.f32 %v1814, %v1890
        %v1892 = vpop.f32.mrb[0].mxu0
        %v1893 = vadd.f32 %v1816, %v1892
        %1894 = vdwg.mxu0
        %1895 = vmatprep.subr.mxu0 %v1109
        %1896 = vmatpush1.xpose.msra.mxu0 %v1108
        %1897 = vmatprep.subr.mxu0 %v1121
        %1898 = vmatpush1.xpose.msra.mxu0 %v1120
        %1899 = vmatprep.subr.mxu0 %v1133
        %1900 = vmatpush1.xpose.msra.mxu0 %v1132
        %1901 = vmatprep.subr.mxu0 %v1145
        %1902 = vmatpush1.xpose.msra.mxu0 %v1144
        %1903 = vmatprep.subr.mxu0 %v1157
        %1904 = vmatpush1.xpose.msra.mxu0 %v1156
        %1905 = vmatprep.subr.mxu0 %v1169
        %1906 = vmatpush1.xpose.msra.mxu0 %v1168
        %1907 = vmatprep.subr.mxu0 %v1181
        %1908 = vmatpush1.xpose.msra.mxu0 %v1180
        %1909 = vmatprep.subr.mxu0 %v1193
        %1910 = vmatpush1.xpose.msra.mxu0 %v1192
        %1911 = vmatprep.subr.mxu0 %v1205
        %1912 = vmatpush1.xpose.msra.mxu0 %v1204
        %1913 = vmatprep.subr.mxu0 %v1217
        %1914 = vmatpush1.xpose.msra.mxu0 %v1216
        %1915 = vmatprep.subr.mxu0 %v1229
        %1916 = vmatpush1.xpose.msra.mxu0 %v1228
        %1917 = vmatprep.subr.mxu0 %v1241
        %1918 = vmatpush1.xpose.msra.mxu0 %v1240
        %1919 = vmatprep.subr.mxu0 %v1253
        %1920 = vmatpush1.xpose.msra.mxu0 %v1252
        %1921 = vmatprep.subr.mxu0 %v1265
        %1922 = vmatpush1.xpose.msra.mxu0 %v1264
        %1923 = vmatprep.subr.mxu0 %v1277
        %1924 = vmatpush1.xpose.msra.mxu0 %v1276
        %1925 = vmatprep.subr.mxu0 %v1289
        %1926 = vmatpush1.xpose.msra.mxu0 %v1288
        %1927 = vmatprep.subr.mxu0 %v1301
        %1928 = vmatpush1.xpose.msra.mxu0 %v1300
        %1929 = vmatprep.subr.mxu0 %v1313
        %1930 = vmatpush1.xpose.msra.mxu0 %v1312
        %1931 = vmatprep.subr.mxu0 %v1325
        %1932 = vmatpush1.xpose.msra.mxu0 %v1324
        %1933 = vmatprep.subr.mxu0 %v1337
        %1934 = vmatpush1.xpose.msra.mxu0 %v1336
        %1935 = vmatprep.subr.mxu0 %v1349
        %1936 = vmatpush1.xpose.msra.mxu0 %v1348
        %1937 = vmatprep.subr.mxu0 %v1361
        %1938 = vmatpush1.xpose.msra.mxu0 %v1360
        %1939 = vmatprep.subr.mxu0 %v1373
        %1940 = vmatpush1.xpose.msra.mxu0 %v1372
        %1941 = vmatprep.subr.mxu0 %v1385
        %1942 = vmatpush1.xpose.msra.mxu0 %v1384
        %1943 = vmatprep.subr.mxu0 %v1397
        %1944 = vmatpush1.xpose.msra.mxu0 %v1396
        %1945 = vmatprep.subr.mxu0 %v1409
        %1946 = vmatpush1.xpose.msra.mxu0 %v1408
        %1947 = vmatprep.subr.mxu0 %v1421
        %1948 = vmatpush1.xpose.msra.mxu0 %v1420
        %1949 = vmatprep.subr.mxu0 %v1433
        %1950 = vmatpush1.xpose.msra.mxu0 %v1432
        %1951 = vmatprep.subr.mxu0 %v1445
        %1952 = vmatpush1.xpose.msra.mxu0 %v1444
        %1953 = vmatprep.subr.mxu0 %v1457
        %1954 = vmatpush1.xpose.msra.mxu0 %v1456
        %1955 = vmatprep.subr.mxu0 %v1469
        %1956 = vmatpush1.xpose.msra.mxu0 %v1468
        %1957 = vmatprep.subr.mxu0 %v1481
        %1958 = vmatpush1.xpose.msra.mxu0 %v1480
        %1959 = vmatprep.mubr.f32.mxu0 %v1497
        %1960 = vmatmul.mubr.f32.gmra.mrb[0].mxu0 %v1496
        %v1961 = vpop.f32.mrb[0].mxu0
        %v1962 = vadd.f32 %v1885, %v1961
        %v1963 = vpop.f32.mrb[0].mxu0
        %v1964 = vadd.f32 %v1887, %v1963
        %1965 = vmatprep.mubr.f32.mxu0 %v1509
        %1966 = vmatmul.mubr.f32.gmra.mrb[0].mxu0 %v1508
        %v1967 = vpop.f32.mrb[0].mxu0
        %v1968 = vadd.f32 %v1891, %v1967
        %v1969 = vpop.f32.mrb[0].mxu0
        %v1970 = vadd.f32 %v1893, %v1969
        %1971 = vdwg.mxu0
        %v1972 = vadd.f32 %v1482, %v1962
        %v1973 = vadd.f32 %v1483, %v1964
        %v1974 = vadd.f32 %v1484, %v1968
        %v1975 = vadd.f32 %v1485, %v1970
        %1976 = vst [vmem:[#allocation2] sm:$0xff] %v1972
        %1977 = vst [vmem:[#allocation2 + $0x8] sm:$0xff] %v1973
        %1978 = vst [vmem:[#allocation2 + $0x10] sm:$0xff] %v1974
        %1979 = vst [vmem:[#allocation2 + $0x18] sm:$0xff] %v1975
        %s1980 = sld [smem:[#allocation7 + %s42]]
        %p1981 = scmp.eq.s32.totalorder %s1980, 1
        // Predicated region
        $region41: #{tpu_custom_call.1} parent=27 // pred_check
          %p1982 = pneg %p1981
        $region42: #{tpu_custom_call.1} parent=27 // pred_check_branch
          %1984 = sbr.rel (%p1982) target = $region44
        $region43: #{tpu_custom_call.1} parent=27 // pred_region
          %v1985 = vld [vmem:[#allocation2] sm:$0xff]
          %v1986 = vld [vmem:[#allocation2 + $0x8] sm:$0xff]
          %v1987 = vld [vmem:[#allocation2 + $0x10] sm:$0xff]
          %v1988 = vld [vmem:[#allocation2 + $0x18] sm:$0xff]
          %1989 = vst [vmem:[%s227] sm:$0xff] %v1985
          %1990 = vst [vmem:[%s227 + $0x8] sm:$0xff] %v1986
          %1991 = vst [vmem:[%s227 + $0x10] sm:$0xff] %v1987
          %1992 = vst [vmem:[%s227 + $0x18] sm:$0xff] %v1988
        $region44: #{tpu_custom_call.1} parent=27 // pred_fallthru
          _
        %s1993 = sand.u32 %s108, 1
        %s1994 = scalar_lea.sflag [#allocation10], %s1993
        %s1995 = sand.u32 %s108, 1
        %s1996 = smul.addr %s1995, 32
        %s1997 = scalar_lea.vmem [#allocation13], %s1996
        // Predicated region
        $region45: #{tpu_custom_call.1} parent=27 // pred_check
          %p1998 = pneg %p118
        $region46: #{tpu_custom_call.1} parent=27 // pred_check_branch
          %2000 = sbr.rel (%p1998) target = $region48
        $region47: #{tpu_custom_call.1} parent=27 // pred_region
          %s2001 = sld [smem:[#allocation4 + %s42]]
          %s2002 = smul.u32 2, %s2001
          %s2004 = ssub.s32 512, 512
          %2005 = vsyncadd %s1994, %s2004
          %s2006 = smul.addr %s2002, 128
          %s2007 = scalar_lea.hbm %s6, %s2006
          %s2008 = sshll.u32 %s1997, 4
          %s2009 = int_to_ptr.vmem [resolvable:$true] %s2008
          %2014 = dma.vmem_to_hbm [thread:$0]  %s2009, 512, %s2007, %s1994, 256, 768, 16
        $region48: #{tpu_custom_call.1} parent=27 // pred_fallthru
          _
      $region28: #{tpu_custom_call.1} parent=5 // pred_fallthru
        _
      %p2015 = scmp.le.s32.totalorder 2, %s37
      // Predicated region
      $region49: #{tpu_custom_call.1} parent=5 // pred_check
        %p2016 = pneg %p2015
      $region50: #{tpu_custom_call.1} parent=5 // pred_check_branch
        %2018 = sbr.rel (%p2016) target = $region52
      $region51: #{tpu_custom_call.1} parent=5 // pred_region
        %s2019 = ssub.s32 %s37, 2
        // Predicated region
        $region53: #{tpu_custom_call.1} parent=51 // pred_check
          %p2020 = pneg %p124
        $region54: #{tpu_custom_call.1} parent=51 // pred_check_branch
          %2022 = sbr.rel (%p2020) target = $region56
        $region55: #{tpu_custom_call.1} parent=51 // pred_region
          %s2023 = sand.u32 %s109, 1
          %s2024 = scalar_lea.sflag [#allocation10], %s2023
          %s2025 = sand.u32 %s109, 1
          %s2026 = smul.addr %s2025, 32
          %s2027 = scalar_lea.vmem [#allocation13], %s2026
          %2028 = dma.done %s2024, 512
        $region56: #{tpu_custom_call.1} parent=51 // pred_fallthru
          _
      $region52: #{tpu_custom_call.1} parent=5 // pred_fallthru
        _
    $region6: #{tpu_custom_call.1} parent=1 // loop_footer
      %s41 = sadd.s32 1, %s37
    $region7: #{tpu_custom_call.1} parent=1 // loop_footer_branch
      %36 = sbr.rel target = $region3
    $region8: #{tpu_custom_call.1} parent=1 // loop_exit
      _
    %2029 = vsyncpa [#allocation9], 1
    %s2030 = scalar_lea.sflag [#allocation9], 1
    %2031 = vsyncpa %s2030, 1
    %2032 = vsyncpa [#allocation12], 1
    %s2033 = scalar_lea.sflag [#allocation12], 1
    %2034 = vsyncpa %s2033, 1
    %2035 = vsyncpa [#allocation10], 1
    %s2036 = scalar_lea.sflag [#allocation10], 1
    %2037 = vsyncpa %s2036, 1

</llo_original>
